<compile_context>
chip_gen: v6e
topology: v6e:2x2x1
jax: 0.10.0
libtpu: 0.0.40
codegen_flags: <defaults>
</compile_context>

<pallas_src>
import jax
import jax.numpy as jnp
from jax.experimental import pallas as pl
from jax.experimental.pallas import tpu as pltpu

NTH = 4                     # nth argument of Model.__init__
SEQ = 6                     # LSTM sequence length (z is (1, 6, 35) in torch)
EMB_DIM = 5
LSTM_IN = 5 * 7             # 35
HID = 128
XREST = 20 + 5 * 40 + NTH * 5 + 16   # 256 (revealed + 5 mlp sums + played + outof)
FC1_IN = HID + XREST                 # 384
FC = 256
HEAD_W = 128                # merged, lane-dense p/v head width
FCW = 3 * FC + HEAD_W       # 896: [w1x | w2 | w3 | wpv] column-concat
EPS = 1e-5                  # nn.LayerNorm default


def _layernorm_relu(x, gamma, beta):
    # Two-pass LayerNorm (matches torch numerics) + fused ReLU, rsqrt on EUP.
    m = jnp.mean(x, axis=-1, keepdims=True)
    d = x - m
    v = jnp.mean(d * d, axis=-1, keepdims=True)
    y = d * jax.lax.rsqrt(v + EPS) * gamma + beta
    return jnp.maximum(y, 0.0)


def _model_kernel(z_ref, xrest_ref, wih_ref, whh_w1h_ref, aux_ref, wfc_hbm_ref,
                  pv_ref, wfc_vmem, xw_ref, fc_sem):
    # Kick off the big FC-weight HBM->VMEM DMA immediately; the serial LSTM
    # below hides (most of) it.
    fc_copy = pltpu.make_async_copy(wfc_hbm_ref, wfc_vmem, fc_sem)
    fc_copy.start()

    # Hoisted input projection: ONE (6,35)x(35,512) bf16 matmul + fused
    # (b_ih + b_hh), staged to VMEM so the recurrence does single-sublane loads.
    xw_ref[...] = (jnp.dot(z_ref[...], wih_ref[...],
                           preferred_element_type=jnp.float32)
                   + aux_ref[0:1, :])

    whh = whh_w1h_ref[:, 0:4 * HID]          # (128, 512) bf16, gates [i,f,o,g]

    h = jnp.zeros((1, HID), jnp.float32)
    c = jnp.zeros((1, HID), jnp.float32)
    # LSTM recurrence: 6 serial steps, statically unrolled.
    for t in range(SEQ):
        gates = xw_ref[t:t + 1, :] + jnp.dot(h.astype(jnp.bfloat16), whh,
                                             preferred_element_type=jnp.float32)
        sig = jax.nn.sigmoid(gates[:, :3 * HID])    # i | f | o in one slice
        g_g = jnp.tanh(gates[:, 3 * HID:])
        c = sig[:, HID:2 * HID] * c + sig[:, 0:HID] * g_g
        h = sig[:, 2 * HID:3 * HID] * jnp.tanh(c)

    # FC weights must be resident from here on.
    fc_copy.wait()

    w1h = whh_w1h_ref[:, 4 * HID:]           # (128, 256) bf16 (fc1, h columns)

    # fc1 on cat([h_n, x_rest]) as two partial matmuls (avoids concat).
    x = (jnp.dot(h.astype(jnp.bfloat16), w1h, preferred_element_type=jnp.float32)
         + jnp.dot(xrest_ref[...], wfc_vmem[:, 0:FC],
                   preferred_element_type=jnp.float32)
         + aux_ref[1:2, 0:FC])
    x = _layernorm_relu(x, aux_ref[2:3, 0:FC], aux_ref[3:4, 0:FC])
    # dropout1/2/3: identity (inference/eval semantics)
    x = (jnp.dot(x.astype(jnp.bfloat16), wfc_vmem[:, FC:2 * FC],
                 preferred_element_type=jnp.float32) + aux_ref[4:5, 0:FC])
    x = _layernorm_relu(x, aux_ref[5:6, 0:FC], aux_ref[6:7, 0:FC])
    x = (jnp.dot(x.astype(jnp.bfloat16), wfc_vmem[:, 2 * FC:3 * FC],
                 preferred_element_type=jnp.float32) + aux_ref[7:8, 0:FC])
    x = _layernorm_relu(x, aux_ref[8:9, 0:FC], aux_ref[9:10, 0:FC])

    # Merged lane-dense p/v head: one (1,256)x(256,128) matmul, one dense store
    # (cols 0..31 = p, col 32 = v, rest zero-padded).
    pv_ref[...] = (jnp.dot(x.astype(jnp.bfloat16), wfc_vmem[:, 3 * FC:],
                           preferred_element_type=jnp.float32)
                   + aux_ref[10:11, 0:HEAD_W])


def prepare_params(params):
    """One-time parameter layout prep. Call once, reuse across invocations."""
    # Gate reorder: PyTorch rows are [i, f, g, o] -> reorder to [i, f, o, g].
    perm = jnp.concatenate([
        jnp.arange(0, 2 * HID),            # i, f
        jnp.arange(3 * HID, 4 * HID),      # o
        jnp.arange(2 * HID, 3 * HID),      # g
    ])
    wih_t = params['lstm_w_ih'][perm].T.astype(jnp.bfloat16)       # (35, 512)
    whh_t = params['lstm_w_hh'][perm].T                            # (128, 512)
    b_lstm = (params['lstm_b_ih'] + params['lstm_b_hh'])[perm]     # (512,) f32

    w1 = params['fc1_w']                                           # (256, 384)
    w1h_t = w1[:, :HID].T                                          # (128, 256)
    w1x_t = w1[:, HID:].T                                          # (256, 256)

    # Recurrent + fc1-h weights share one lane-aligned bf16 slab: (128, 768).
    whh_w1h = jnp.concatenate([whh_t, w1h_t], axis=1).astype(jnp.bfloat16)

    # Merged p/v head padded to a lane-dense 128-wide output.
    wpv = jnp.zeros((FC, HEAD_W), jnp.float32)
    wpv = wpv.at[:, :32].set(params['p_w'].T)
    wpv = wpv.at[:, 32:33].set(params['v_w'].T)

    # All 256-row FC weights in ONE bf16 slab: (256, 896) = [w1x | w2 | w3 | wpv].
    wfc = jnp.concatenate(
        [w1x_t, params['fc2_w'].T, params['fc3_w'].T, wpv],
        axis=1).astype(jnp.bfloat16)

    # Every small constant in one f32 aux array (one tiny DMA):
    #   row 0      : fused LSTM bias (512)
    #   rows 1..9  : fc1_b, n1_g, n1_b, fc2_b, n2_g, n2_b, fc3_b, n3_g, n3_b (cols 0..255)
    #   row 10     : merged p/v bias (cols 0..127)
    aux = jnp.zeros((11, 512), jnp.float32)
    aux = aux.at[0, :].set(b_lstm)
    small = ['fc1_b', 'norm1_g', 'norm1_b', 'fc2_b', 'norm2_g', 'norm2_b',
             'fc3_b', 'norm3_g', 'norm3_b']
    for r, name in enumerate(small):
        aux = aux.at[r + 1, 0:FC].set(params[name])
    aux = aux.at[10, 0:32].set(params['p_b'])
    aux = aux.at[10, 32].set(params['v_b'][0])

    return dict(wih=wih_t, whh_w1h=whh_w1h, aux=aux, wfc=wfc)


@jax.jit
def pallas_forward(z, x_rest, prep):
    z_bf = z.astype(jnp.bfloat16)
    x_bf = x_rest.astype(jnp.bfloat16)
    vmem = pl.BlockSpec(memory_space=pltpu.MemorySpace.VMEM)
    any_spec = pl.BlockSpec(memory_space=pl.ANY)   # FC slab: manual async DMA
    pv = pl.pallas_call(
        _model_kernel,
        out_shape=jax.ShapeDtypeStruct((1, HEAD_W), jnp.float32),
        in_specs=[vmem, vmem, vmem, vmem, vmem, any_spec],
        out_specs=vmem,
        scratch_shapes=[
            pltpu.VMEM((FC, FCW), jnp.bfloat16),       # FC-weight landing buffer
            pltpu.VMEM((SEQ, 4 * HID), jnp.float32),   # staged input projection
            pltpu.SemaphoreType.DMA,
        ],
    )(z_bf, x_bf, prep['wih'], prep['whh_w1h'], prep['aux'], prep['wfc'])
    return pv[:, :32], pv[:, 32:33]


def encoder(params, revealed_owner, card_revealed, hands, n1, n2, n3,
            remains, played, outof, h_idx):
    """Plain-JAX glue equivalent of Model.encoder (embedding gathers etc.)."""
    E = params['emb']                                   # (32, 5)
    mlp_w, mlp_b = params['mlp_w'], params['mlp_b']     # (40, 5), (40,)

    revealed = jnp.zeros((4, EMB_DIM), jnp.float32).at[revealed_owner].set(E[card_revealed])
    revealed = revealed.reshape(1, -1)                  # (1, 20)

    def summed(idx):
        # Linear-then-sum == W @ sum(emb) + len * b (exactly what torch computes)
        return (E[idx].sum(axis=0) @ mlp_w.T + idx.shape[0] * mlp_b).reshape(1, -1)

    feats = [summed(t) for t in (hands, n1, n2, n3, remains)]   # 5 x (1, 40)
    played_f = E[played].reshape(1, -1)                 # (1, NTH*5)
    x_rest = jnp.concatenate([revealed] + feats + [played_f, outof], axis=-1)  # (1, 256)
    z = E[h_idx].reshape(SEQ, LSTM_IN)                  # (6, 35)
    return z, x_rest


def model_forward(params, prep, *args):
    z, x_rest = encoder(params, *args)
    return pallas_forward(z, x_rest, prep)


def reference_forward(params, z, x_rest, matmul_dtype=jnp.float32):
    """Pure-JAX reference of the part implemented in the Pallas kernel.

    matmul_dtype=bf16 emulates the kernel's MXU operand precision exactly.
    """
    def mm(a, b):
        return jnp.dot(a.astype(matmul_dtype), b.astype(matmul_dtype),
                       preferred_element_type=jnp.float32)

    wih, whh = params['lstm_w_ih'], params['lstm_w_hh']
    b = (params['lstm_b_ih'] + params['lstm_b_hh']).reshape(1, -1)
    h = jnp.zeros((1, HID), jnp.float32)
    c = jnp.zeros((1, HID), jnp.float32)
    for t in range(SEQ):
        gates = mm(z[t:t + 1], wih.T) + mm(h, whh.T) + b
        i = jax.nn.sigmoid(gates[:, :HID])
        f = jax.nn.sigmoid(gates[:, HID:2 * HID])
        g = jnp.tanh(gates[:, 2 * HID:3 * HID])
        o = jax.nn.sigmoid(gates[:, 3 * HID:])
        c = f * c + i * g
        h = o * jnp.tanh(c)
    x = jnp.concatenate([h, x_rest], axis=-1)

    def block(x, w, bb, g, be):
        x = mm(x, w.T) + bb
        m = x.mean(-1, keepdims=True)
        v = ((x - m) ** 2).mean(-1, keepdims=True)
        return jnp.maximum((x - m) / jnp.sqrt(v + EPS) * g + be, 0.0)

    x = block(x, params['fc1_w'], params['fc1_b'], params['norm1_g'], params['norm1_b'])
    x = block(x, params['fc2_w'], params['fc2_b'], params['norm2_g'], params['norm2_b'])
    x = block(x, params['fc3_w'], params['fc3_b'], params['norm3_g'], params['norm3_b'])
    return mm(x, params['p_w'].T) + params['p_b'], mm(x, params['v_w'].T) + params['v_b']


def init_params(key):
    ks = jax.random.split(key, 20)

    def w(k, shape, scale=0.1):
        return scale * jax.random.normal(k, shape, jnp.float32)

    return {
        'emb': w(ks[0], (32, EMB_DIM)),
        'mlp_w': w(ks[1], (40, EMB_DIM)), 'mlp_b': w(ks[2], (40,)),
        'lstm_w_ih': w(ks[3], (4 * HID, LSTM_IN)),
        'lstm_w_hh': w(ks[4], (4 * HID, HID)),
        'lstm_b_ih': w(ks[5], (4 * HID,)), 'lstm_b_hh': w(ks[6], (4 * HID,)),
        'fc1_w': w(ks[7], (FC, FC1_IN)), 'fc1_b': w(ks[8], (FC,)),
        'norm1_g': jnp.ones((FC,), jnp.float32), 'norm1_b': jnp.zeros((FC,), jnp.float32),
        'fc2_w': w(ks[9], (FC, FC)), 'fc2_b': w(ks[10], (FC,)),
        'norm2_g': jnp.ones((FC,), jnp.float32), 'norm2_b': jnp.zeros((FC,), jnp.float32),
        'fc3_w': w(ks[11], (FC, FC)), 'fc3_b': w(ks[12], (FC,)),
        'norm3_g': jnp.ones((FC,), jnp.float32), 'norm3_b': jnp.zeros((FC,), jnp.float32),
        'p_w': w(ks[13], (32, FC)), 'p_b': w(ks[14], (32,)),
        'v_w': w(ks[15], (1, FC)), 'v_b': w(ks[16], (1,)),
    }


if __name__ == "__main__":
    key = jax.random.PRNGKey(0)
    kp, ki = jax.random.split(key)
    params = init_params(kp)
    prep = prepare_params(params)          # one-time layout prep, off the hot path
    prep = jax.tree_util.tree_map(jax.block_until_ready, prep)

    kk = jax.random.split(ki, 8)
    revealed_owner = jnp.array(2, jnp.int32)
    card_revealed = jnp.array(17, jnp.int32)
    hands = jax.random.randint(kk[0], (7,), 0, 32)
    next_1_played = jax.random.randint(kk[1], (6,), 0, 32)
    next_2_played = jax.random.randint(kk[2], (6,), 0, 32)
    next_3_played = jax.random.randint(kk[3], (6,), 0, 32)
    remains = jax.random.randint(kk[4], (13,), 0, 32)
    played = jax.random.randint(kk[5], (NTH,), 0, 32)
    outof = jax.random.normal(kk[6], (1, 16), jnp.float32)
    h_idx = jax.random.randint(kk[7], (SEQ * 7,), 0, 32)   # emb(h).reshape(1, 6, 35)

    z, x_rest = encoder(params, revealed_owner, card_revealed, hands,
                        next_1_played, next_2_played, next_3_played,
                        remains, played, outof, h_idx)
    p_out, v_out = pallas_forward(z, x_rest, prep)
    jax.block_until_ready((p_out, v_out))

    assert p_out.shape == (1, 32) and v_out.shape == (1, 1)

    # Exact-logic check against a reference that uses the same bf16 MXU-operand
    # precision as the kernel (tight tolerance).
    p_bf, v_bf = reference_forward(params, z, x_rest, matmul_dtype=jnp.bfloat16)
    assert jnp.allclose(p_out, p_bf, atol=2e-3, rtol=2e-3)
    assert jnp.allclose(v_out, v_bf, atol=2e-3, rtol=2e-3)

    # Semantics check against the full-f32 reference of the original module;
    # looser tolerance only because matmul operands are bf16-quantized.
    p_ref, v_ref = reference_forward(params, z, x_rest)
    assert jnp.allclose(p_out, p_ref, atol=5e-2, rtol=5e-2)
    assert jnp.allclose(v_out, v_ref, atol=5e-2, rtol=5e-2)
    print("KERNEL_OK")
</pallas_src>

<mosaic_0001>
module attributes {stable_mosaic.version = 11 : i64} {
  func.func @_model_kernel(%arg0: memref<6x35xbf16, #tpu.memory_space<vmem>>, %arg1: memref<1x256xbf16, #tpu.memory_space<vmem>>, %arg2: memref<35x512xbf16, #tpu.memory_space<vmem>>, %arg3: memref<128x768xbf16, #tpu.memory_space<vmem>>, %arg4: memref<11x512xf32, #tpu.memory_space<vmem>>, %arg5: memref<256x896xbf16, #tpu.memory_space<any>>, %arg6: memref<1x128xf32, #tpu.memory_space<vmem>>, %arg7: memref<256x896xbf16, #tpu.memory_space<vmem>>, %arg8: memref<6x512xf32, #tpu.memory_space<vmem>>, %arg9: memref<!tpu.dma_semaphore, #tpu.memory_space<semaphore_mem>>) attributes {dimension_semantics = [], scalar_prefetch = 0 : i64, scratch_operands = 3 : i64, tpu.core_type = #tpu.core_type<tc>} {
    tpu.enqueue_dma source(%arg5 : memref<256x896xbf16, #tpu.memory_space<any>>) target(%arg7 : memref<256x896xbf16, #tpu.memory_space<vmem>>) target_semaphore(%arg9 : memref<!tpu.dma_semaphore, #tpu.memory_space<semaphore_mem>>)
    %c0 = arith.constant 0 : index
    %c0_0 = arith.constant 0 : index
    %0 = vector.load %arg0[%c0, %c0_0] : memref<6x35xbf16, #tpu.memory_space<vmem>>, vector<6x35xbf16>
    %c0_1 = arith.constant 0 : index
    %c0_2 = arith.constant 0 : index
    %1 = vector.load %arg2[%c0_1, %c0_2] : memref<35x512xbf16, #tpu.memory_space<vmem>>, vector<35x512xbf16>
    %cst = arith.constant dense<0.000000e+00> : vector<6x512xf32>
    %2 = tpu.matmul %0, %1, %cst {dimension_numbers = #tpu.dot_dimension_numbers<[1], [0], [0], [1], [0, 0, 1, 1], [], []>} : vector<6x35xbf16>, vector<35x512xbf16>, vector<6x512xf32> -> vector<6x512xf32>
    %c0_3 = arith.constant 0 : index
    %c0_4 = arith.constant 0 : index
    %3 = vector.load %arg4[%c0_3, %c0_4] : memref<11x512xf32, #tpu.memory_space<vmem>>, vector<1x512xf32>
    %4 = vector.broadcast %3 : vector<1x512xf32> to vector<6x512xf32>
    %5 = arith.addf %2, %4 : vector<6x512xf32>
    %c0_5 = arith.constant 0 : index
    %c0_6 = arith.constant 0 : index
    %6 = vector.load %arg8[%c0_5, %c0_6] : memref<6x512xf32, #tpu.memory_space<vmem>>, vector<6x512xf32>
    tpu.vector_store %arg8[%c0_5, %c0_6], %5 {strides = array<i32>} : memref<6x512xf32, #tpu.memory_space<vmem>>, vector<6x512xf32>,
    %c0_7 = arith.constant 0 : index
    %c0_8 = arith.constant 0 : index
    %7 = vector.load %arg3[%c0_7, %c0_8] : memref<128x768xbf16, #tpu.memory_space<vmem>>, vector<128x512xbf16>
    %cst_9 = arith.constant 0.000000e+00 : f32
    %8 = vector.broadcast %cst_9 : f32 to vector<1x128xf32>
    %cst_10 = arith.constant 0.000000e+00 : f32
    %9 = vector.broadcast %cst_10 : f32 to vector<1x128xf32>
    %c0_11 = arith.constant 0 : index
    %c0_12 = arith.constant 0 : index
    %10 = vector.load %arg8[%c0_11, %c0_12] : memref<6x512xf32, #tpu.memory_space<vmem>>, vector<1x512xf32>
    %11 = arith.truncf %8 : vector<1x128xf32> to vector<1x128xbf16>
    %cst_13 = arith.constant dense<0.000000e+00> : vector<1x512xf32>
    %12 = tpu.matmul %11, %7, %cst_13 {dimension_numbers = #tpu.dot_dimension_numbers<[1], [0], [0], [1], [0, 0, 1, 1], [], []>} : vector<1x128xbf16>, vector<128x512xbf16>, vector<1x512xf32> -> vector<1x512xf32>
    %13 = arith.addf %10, %12 : vector<1x512xf32>
    %14 = vector.extract_strided_slice %13 {offsets = [0, 0], sizes = [1, 384], strides = [1, 1]} : vector<1x512xf32> to vector<1x384xf32>
    %15 = arith.negf %14 : vector<1x384xf32>
    %16 = math.exp %15 : vector<1x384xf32>
    %cst_14 = arith.constant 1.000000e+00 : f32
    %17 = vector.broadcast %cst_14 : f32 to vector<1x384xf32>
    %18 = arith.addf %17, %16 : vector<1x384xf32>
    %19 = arith.divf %17, %18 : vector<1x384xf32>
    %20 = vector.extract_strided_slice %13 {offsets = [0, 384], sizes = [1, 128], strides = [1, 1]} : vector<1x512xf32> to vector<1x128xf32>
    %21 = math.tanh %20 : vector<1x128xf32>
    %22 = vector.extract_strided_slice %19 {offsets = [0, 128], sizes = [1, 128], strides = [1, 1]} : vector<1x384xf32> to vector<1x128xf32>
    %23 = arith.mulf %22, %9 : vector<1x128xf32>
    %24 = vector.extract_strided_slice %19 {offsets = [0, 0], sizes = [1, 128], strides = [1, 1]} : vector<1x384xf32> to vector<1x128xf32>
    %25 = arith.mulf %24, %21 : vector<1x128xf32>
    %26 = arith.addf %23, %25 : vector<1x128xf32>
    %27 = vector.extract_strided_slice %19 {offsets = [0, 256], sizes = [1, 128], strides = [1, 1]} : vector<1x384xf32> to vector<1x128xf32>
    %28 = math.tanh %26 : vector<1x128xf32>
    %29 = arith.mulf %27, %28 : vector<1x128xf32>
    %c1 = arith.constant 1 : index
    %c0_15 = arith.constant 0 : index
    %30 = vector.load %arg8[%c1, %c0_15] : memref<6x512xf32, #tpu.memory_space<vmem>>, vector<1x512xf32>
    %31 = arith.truncf %29 : vector<1x128xf32> to vector<1x128xbf16>
    %cst_16 = arith.constant dense<0.000000e+00> : vector<1x512xf32>
    %32 = tpu.matmul %31, %7, %cst_16 {dimension_numbers = #tpu.dot_dimension_numbers<[1], [0], [0], [1], [0, 0, 1, 1], [], []>} : vector<1x128xbf16>, vector<128x512xbf16>, vector<1x512xf32> -> vector<1x512xf32>
    %33 = arith.addf %30, %32 : vector<1x512xf32>
    %34 = vector.extract_strided_slice %33 {offsets = [0, 0], sizes = [1, 384], strides = [1, 1]} : vector<1x512xf32> to vector<1x384xf32>
    %35 = arith.negf %34 : vector<1x384xf32>
    %36 = math.exp %35 : vector<1x384xf32>
    %cst_17 = arith.constant 1.000000e+00 : f32
    %37 = vector.broadcast %cst_17 : f32 to vector<1x384xf32>
    %38 = arith.addf %37, %36 : vector<1x384xf32>
    %39 = arith.divf %37, %38 : vector<1x384xf32>
    %40 = vector.extract_strided_slice %33 {offsets = [0, 384], sizes = [1, 128], strides = [1, 1]} : vector<1x512xf32> to vector<1x128xf32>
    %41 = math.tanh %40 : vector<1x128xf32>
    %42 = vector.extract_strided_slice %39 {offsets = [0, 128], sizes = [1, 128], strides = [1, 1]} : vector<1x384xf32> to vector<1x128xf32>
    %43 = arith.mulf %42, %26 : vector<1x128xf32>
    %44 = vector.extract_strided_slice %39 {offsets = [0, 0], sizes = [1, 128], strides = [1, 1]} : vector<1x384xf32> to vector<1x128xf32>
    %45 = arith.mulf %44, %41 : vector<1x128xf32>
    %46 = arith.addf %43, %45 : vector<1x128xf32>
    %47 = vector.extract_strided_slice %39 {offsets = [0, 256], sizes = [1, 128], strides = [1, 1]} : vector<1x384xf32> to vector<1x128xf32>
    %48 = math.tanh %46 : vector<1x128xf32>
    %49 = arith.mulf %47, %48 : vector<1x128xf32>
    %c2 = arith.constant 2 : index
    %c0_18 = arith.constant 0 : index
    %50 = vector.load %arg8[%c2, %c0_18] : memref<6x512xf32, #tpu.memory_space<vmem>>, vector<1x512xf32>
    %51 = arith.truncf %49 : vector<1x128xf32> to vector<1x128xbf16>
    %cst_19 = arith.constant dense<0.000000e+00> : vector<1x512xf32>
    %52 = tpu.matmul %51, %7, %cst_19 {dimension_numbers = #tpu.dot_dimension_numbers<[1], [0], [0], [1], [0, 0, 1, 1], [], []>} : vector<1x128xbf16>, vector<128x512xbf16>, vector<1x512xf32> -> vector<1x512xf32>
    %53 = arith.addf %50, %52 : vector<1x512xf32>
    %54 = vector.extract_strided_slice %53 {offsets = [0, 0], sizes = [1, 384], strides = [1, 1]} : vector<1x512xf32> to vector<1x384xf32>
    %55 = arith.negf %54 : vector<1x384xf32>
    %56 = math.exp %55 : vector<1x384xf32>
    %cst_20 = arith.constant 1.000000e+00 : f32
    %57 = vector.broadcast %cst_20 : f32 to vector<1x384xf32>
    %58 = arith.addf %57, %56 : vector<1x384xf32>
    %59 = arith.divf %57, %58 : vector<1x384xf32>
    %60 = vector.extract_strided_slice %53 {offsets = [0, 384], sizes = [1, 128], strides = [1, 1]} : vector<1x512xf32> to vector<1x128xf32>
    %61 = math.tanh %60 : vector<1x128xf32>
    %62 = vector.extract_strided_slice %59 {offsets = [0, 128], sizes = [1, 128], strides = [1, 1]} : vector<1x384xf32> to vector<1x128xf32>
    %63 = arith.mulf %62, %46 : vector<1x128xf32>
    %64 = vector.extract_strided_slice %59 {offsets = [0, 0], sizes = [1, 128], strides = [1, 1]} : vector<1x384xf32> to vector<1x128xf32>
    %65 = arith.mulf %64, %61 : vector<1x128xf32>
    %66 = arith.addf %63, %65 : vector<1x128xf32>
    %67 = vector.extract_strided_slice %59 {offsets = [0, 256], sizes = [1, 128], strides = [1, 1]} : vector<1x384xf32> to vector<1x128xf32>
    %68 = math.tanh %66 : vector<1x128xf32>
    %69 = arith.mulf %67, %68 : vector<1x128xf32>
    %c3 = arith.constant 3 : index
    %c0_21 = arith.constant 0 : index
    %70 = vector.load %arg8[%c3, %c0_21] : memref<6x512xf32, #tpu.memory_space<vmem>>, vector<1x512xf32>
    %71 = arith.truncf %69 : vector<1x128xf32> to vector<1x128xbf16>
    %cst_22 = arith.constant dense<0.000000e+00> : vector<1x512xf32>
    %72 = tpu.matmul %71, %7, %cst_22 {dimension_numbers = #tpu.dot_dimension_numbers<[1], [0], [0], [1], [0, 0, 1, 1], [], []>} : vector<1x128xbf16>, vector<128x512xbf16>, vector<1x512xf32> -> vector<1x512xf32>
    %73 = arith.addf %70, %72 : vector<1x512xf32>
    %74 = vector.extract_strided_slice %73 {offsets = [0, 0], sizes = [1, 384], strides = [1, 1]} : vector<1x512xf32> to vector<1x384xf32>
    %75 = arith.negf %74 : vector<1x384xf32>
    %76 = math.exp %75 : vector<1x384xf32>
    %cst_23 = arith.constant 1.000000e+00 : f32
    %77 = vector.broadcast %cst_23 : f32 to vector<1x384xf32>
    %78 = arith.addf %77, %76 : vector<1x384xf32>
    %79 = arith.divf %77, %78 : vector<1x384xf32>
    %80 = vector.extract_strided_slice %73 {offsets = [0, 384], sizes = [1, 128], strides = [1, 1]} : vector<1x512xf32> to vector<1x128xf32>
    %81 = math.tanh %80 : vector<1x128xf32>
    %82 = vector.extract_strided_slice %79 {offsets = [0, 128], sizes = [1, 128], strides = [1, 1]} : vector<1x384xf32> to vector<1x128xf32>
    %83 = arith.mulf %82, %66 : vector<1x128xf32>
    %84 = vector.extract_strided_slice %79 {offsets = [0, 0], sizes = [1, 128], strides = [1, 1]} : vector<1x384xf32> to vector<1x128xf32>
    %85 = arith.mulf %84, %81 : vector<1x128xf32>
    %86 = arith.addf %83, %85 : vector<1x128xf32>
    %87 = vector.extract_strided_slice %79 {offsets = [0, 256], sizes = [1, 128], strides = [1, 1]} : vector<1x384xf32> to vector<1x128xf32>
    %88 = math.tanh %86 : vector<1x128xf32>
    %89 = arith.mulf %87, %88 : vector<1x128xf32>
    %c4 = arith.constant 4 : index
    %c0_24 = arith.constant 0 : index
    %90 = vector.load %arg8[%c4, %c0_24] : memref<6x512xf32, #tpu.memory_space<vmem>>, vector<1x512xf32>
    %91 = arith.truncf %89 : vector<1x128xf32> to vector<1x128xbf16>
    %cst_25 = arith.constant dense<0.000000e+00> : vector<1x512xf32>
    %92 = tpu.matmul %91, %7, %cst_25 {dimension_numbers = #tpu.dot_dimension_numbers<[1], [0], [0], [1], [0, 0, 1, 1], [], []>} : vector<1x128xbf16>, vector<128x512xbf16>, vector<1x512xf32> -> vector<1x512xf32>
    %93 = arith.addf %90, %92 : vector<1x512xf32>
    %94 = vector.extract_strided_slice %93 {offsets = [0, 0], sizes = [1, 384], strides = [1, 1]} : vector<1x512xf32> to vector<1x384xf32>
    %95 = arith.negf %94 : vector<1x384xf32>
    %96 = math.exp %95 : vector<1x384xf32>
    %cst_26 = arith.constant 1.000000e+00 : f32
    %97 = vector.broadcast %cst_26 : f32 to vector<1x384xf32>
    %98 = arith.addf %97, %96 : vector<1x384xf32>
    %99 = arith.divf %97, %98 : vector<1x384xf32>
    %100 = vector.extract_strided_slice %93 {offsets = [0, 384], sizes = [1, 128], strides = [1, 1]} : vector<1x512xf32> to vector<1x128xf32>
    %101 = math.tanh %100 : vector<1x128xf32>
    %102 = vector.extract_strided_slice %99 {offsets = [0, 128], sizes = [1, 128], strides = [1, 1]} : vector<1x384xf32> to vector<1x128xf32>
    %103 = arith.mulf %102, %86 : vector<1x128xf32>
    %104 = vector.extract_strided_slice %99 {offsets = [0, 0], sizes = [1, 128], strides = [1, 1]} : vector<1x384xf32> to vector<1x128xf32>
    %105 = arith.mulf %104, %101 : vector<1x128xf32>
    %106 = arith.addf %103, %105 : vector<1x128xf32>
    %107 = vector.extract_strided_slice %99 {offsets = [0, 256], sizes = [1, 128], strides = [1, 1]} : vector<1x384xf32> to vector<1x128xf32>
    %108 = math.tanh %106 : vector<1x128xf32>
    %109 = arith.mulf %107, %108 : vector<1x128xf32>
    %c5 = arith.constant 5 : index
    %c0_27 = arith.constant 0 : index
    %110 = vector.load %arg8[%c5, %c0_27] : memref<6x512xf32, #tpu.memory_space<vmem>>, vector<1x512xf32>
    %111 = arith.truncf %109 : vector<1x128xf32> to vector<1x128xbf16>
    %cst_28 = arith.constant dense<0.000000e+00> : vector<1x512xf32>
    %112 = tpu.matmul %111, %7, %cst_28 {dimension_numbers = #tpu.dot_dimension_numbers<[1], [0], [0], [1], [0, 0, 1, 1], [], []>} : vector<1x128xbf16>, vector<128x512xbf16>, vector<1x512xf32> -> vector<1x512xf32>
    %113 = arith.addf %110, %112 : vector<1x512xf32>
    %114 = vector.extract_strided_slice %113 {offsets = [0, 0], sizes = [1, 384], strides = [1, 1]} : vector<1x512xf32> to vector<1x384xf32>
    %115 = arith.negf %114 : vector<1x384xf32>
    %116 = math.exp %115 : vector<1x384xf32>
    %cst_29 = arith.constant 1.000000e+00 : f32
    %117 = vector.broadcast %cst_29 : f32 to vector<1x384xf32>
    %118 = arith.addf %117, %116 : vector<1x384xf32>
    %119 = arith.divf %117, %118 : vector<1x384xf32>
    %120 = vector.extract_strided_slice %113 {offsets = [0, 384], sizes = [1, 128], strides = [1, 1]} : vector<1x512xf32> to vector<1x128xf32>
    %121 = math.tanh %120 : vector<1x128xf32>
    %122 = vector.extract_strided_slice %119 {offsets = [0, 128], sizes = [1, 128], strides = [1, 1]} : vector<1x384xf32> to vector<1x128xf32>
    %123 = arith.mulf %122, %106 : vector<1x128xf32>
    %124 = vector.extract_strided_slice %119 {offsets = [0, 0], sizes = [1, 128], strides = [1, 1]} : vector<1x384xf32> to vector<1x128xf32>
    %125 = arith.mulf %124, %121 : vector<1x128xf32>
    %126 = arith.addf %123, %125 : vector<1x128xf32>
    %127 = vector.extract_strided_slice %119 {offsets = [0, 256], sizes = [1, 128], strides = [1, 1]} : vector<1x384xf32> to vector<1x128xf32>
    %128 = math.tanh %126 : vector<1x128xf32>
    %129 = arith.mulf %127, %128 : vector<1x128xf32>
    tpu.wait_dma2 semaphore(%arg9 : memref<!tpu.dma_semaphore, #tpu.memory_space<semaphore_mem>>) src(%arg5 : memref<256x896xbf16, #tpu.memory_space<any>>) dst(%arg7 : memref<256x896xbf16, #tpu.memory_space<vmem>>)
    %c0_30 = arith.constant 0 : index
    %c512 = arith.constant 512 : index
    %130 = vector.load %arg3[%c0_30, %c512] : memref<128x768xbf16, #tpu.memory_space<vmem>>, vector<128x256xbf16>
    %131 = arith.truncf %129 : vector<1x128xf32> to vector<1x128xbf16>
    %cst_31 = arith.constant dense<0.000000e+00> : vector<1x256xf32>
    %132 = tpu.matmul %131, %130, %cst_31 {dimension_numbers = #tpu.dot_dimension_numbers<[1], [0], [0], [1], [0, 0, 1, 1], [], []>} : vector<1x128xbf16>, vector<128x256xbf16>, vector<1x256xf32> -> vector<1x256xf32>
    %c0_32 = arith.constant 0 : index
    %c0_33 = arith.constant 0 : index
    %133 = vector.load %arg1[%c0_32, %c0_33] : memref<1x256xbf16, #tpu.memory_space<vmem>>, vector<1x256xbf16>
    %c0_34 = arith.constant 0 : index
    %c0_35 = arith.constant 0 : index
    %134 = vector.load %arg7[%c0_34, %c0_35] : memref<256x896xbf16, #tpu.memory_space<vmem>>, vector<256x256xbf16>
    %cst_36 = arith.constant dense<0.000000e+00> : vector<1x256xf32>
    %135 = tpu.matmul %133, %134, %cst_36 {dimension_numbers = #tpu.dot_dimension_numbers<[1], [0], [0], [1], [0, 0, 1, 1], [], []>} : vector<1x256xbf16>, vector<256x256xbf16>, vector<1x256xf32> -> vector<1x256xf32>
    %136 = arith.addf %132, %135 : vector<1x256xf32>
    %c1_37 = arith.constant 1 : index
    %c0_38 = arith.constant 0 : index
    %137 = vector.load %arg4[%c1_37, %c0_38] : memref<11x512xf32, #tpu.memory_space<vmem>>, vector<1x256xf32>
    %138 = arith.addf %136, %137 : vector<1x256xf32>
    %c2_39 = arith.constant 2 : index
    %c0_40 = arith.constant 0 : index
    %139 = vector.load %arg4[%c2_39, %c0_40] : memref<11x512xf32, #tpu.memory_space<vmem>>, vector<1x256xf32>
    %c3_41 = arith.constant 3 : index
    %c0_42 = arith.constant 0 : index
    %140 = vector.load %arg4[%c3_41, %c0_42] : memref<11x512xf32, #tpu.memory_space<vmem>>, vector<1x256xf32>
    %cst_43 = arith.constant dense<0.000000e+00> : vector<1xf32>
    %141 = vector.multi_reduction <add>, %138, %cst_43 [1] : vector<1x256xf32> to vector<1xf32>
    %142 = vector.shape_cast %141 : vector<1xf32> to vector<1x1xf32>
    %cst_44 = arith.constant 2.560000e+02 : f32
    %143 = vector.broadcast %cst_44 : f32 to vector<1x1xf32>
    %144 = arith.divf %142, %143 : vector<1x1xf32>
    %145 = vector.broadcast %144 : vector<1x1xf32> to vector<1x256xf32>
    %146 = arith.subf %138, %145 : vector<1x256xf32>
    %147 = arith.mulf %146, %146 : vector<1x256xf32>
    %cst_45 = arith.constant dense<0.000000e+00> : vector<1xf32>
    %148 = vector.multi_reduction <add>, %147, %cst_45 [1] : vector<1x256xf32> to vector<1xf32>
    %149 = vector.shape_cast %148 : vector<1xf32> to vector<1x1xf32>
    %cst_46 = arith.constant 2.560000e+02 : f32
    %150 = vector.broadcast %cst_46 : f32 to vector<1x1xf32>
    %151 = arith.divf %149, %150 : vector<1x1xf32>
    %cst_47 = arith.constant 9.99999974E-6 : f32
    %152 = vector.broadcast %cst_47 : f32 to vector<1x1xf32>
    %153 = arith.addf %151, %152 : vector<1x1xf32>
    %154 = math.rsqrt %153 : vector<1x1xf32>
    %155 = vector.broadcast %154 : vector<1x1xf32> to vector<1x256xf32>
    %156 = arith.mulf %146, %155 : vector<1x256xf32>
    %157 = arith.mulf %156, %139 : vector<1x256xf32>
    %158 = arith.addf %157, %140 : vector<1x256xf32>
    %cst_48 = arith.constant 0.000000e+00 : f32
    %159 = vector.broadcast %cst_48 : f32 to vector<1x256xf32>
    %160 = arith.maximumf %158, %159 : vector<1x256xf32>
    %161 = arith.truncf %160 : vector<1x256xf32> to vector<1x256xbf16>
    %c0_49 = arith.constant 0 : index
    %c256 = arith.constant 256 : index
    %162 = vector.load %arg7[%c0_49, %c256] : memref<256x896xbf16, #tpu.memory_space<vmem>>, vector<256x256xbf16>
    %cst_50 = arith.constant dense<0.000000e+00> : vector<1x256xf32>
    %163 = tpu.matmul %161, %162, %cst_50 {dimension_numbers = #tpu.dot_dimension_numbers<[1], [0], [0], [1], [0, 0, 1, 1], [], []>} : vector<1x256xbf16>, vector<256x256xbf16>, vector<1x256xf32> -> vector<1x256xf32>
    %c4_51 = arith.constant 4 : index
    %c0_52 = arith.constant 0 : index
    %164 = vector.load %arg4[%c4_51, %c0_52] : memref<11x512xf32, #tpu.memory_space<vmem>>, vector<1x256xf32>
    %165 = arith.addf %163, %164 : vector<1x256xf32>
    %c5_53 = arith.constant 5 : index
    %c0_54 = arith.constant 0 : index
    %166 = vector.load %arg4[%c5_53, %c0_54] : memref<11x512xf32, #tpu.memory_space<vmem>>, vector<1x256xf32>
    %c6 = arith.constant 6 : index
    %c0_55 = arith.constant 0 : index
    %167 = vector.load %arg4[%c6, %c0_55] : memref<11x512xf32, #tpu.memory_space<vmem>>, vector<1x256xf32>
    %cst_56 = arith.constant dense<0.000000e+00> : vector<1xf32>
    %168 = vector.multi_reduction <add>, %165, %cst_56 [1] : vector<1x256xf32> to vector<1xf32>
    %169 = vector.shape_cast %168 : vector<1xf32> to vector<1x1xf32>
    %cst_57 = arith.constant 2.560000e+02 : f32
    %170 = vector.broadcast %cst_57 : f32 to vector<1x1xf32>
    %171 = arith.divf %169, %170 : vector<1x1xf32>
    %172 = vector.broadcast %171 : vector<1x1xf32> to vector<1x256xf32>
    %173 = arith.subf %165, %172 : vector<1x256xf32>
    %174 = arith.mulf %173, %173 : vector<1x256xf32>
    %cst_58 = arith.constant dense<0.000000e+00> : vector<1xf32>
    %175 = vector.multi_reduction <add>, %174, %cst_58 [1] : vector<1x256xf32> to vector<1xf32>
    %176 = vector.shape_cast %175 : vector<1xf32> to vector<1x1xf32>
    %cst_59 = arith.constant 2.560000e+02 : f32
    %177 = vector.broadcast %cst_59 : f32 to vector<1x1xf32>
    %178 = arith.divf %176, %177 : vector<1x1xf32>
    %cst_60 = arith.constant 9.99999974E-6 : f32
    %179 = vector.broadcast %cst_60 : f32 to vector<1x1xf32>
    %180 = arith.addf %178, %179 : vector<1x1xf32>
    %181 = math.rsqrt %180 : vector<1x1xf32>
    %182 = vector.broadcast %181 : vector<1x1xf32> to vector<1x256xf32>
    %183 = arith.mulf %173, %182 : vector<1x256xf32>
    %184 = arith.mulf %183, %166 : vector<1x256xf32>
    %185 = arith.addf %184, %167 : vector<1x256xf32>
    %cst_61 = arith.constant 0.000000e+00 : f32
    %186 = vector.broadcast %cst_61 : f32 to vector<1x256xf32>
    %187 = arith.maximumf %185, %186 : vector<1x256xf32>
    %188 = arith.truncf %187 : vector<1x256xf32> to vector<1x256xbf16>
    %c0_62 = arith.constant 0 : index
    %c512_63 = arith.constant 512 : index
    %189 = vector.load %arg7[%c0_62, %c512_63] : memref<256x896xbf16, #tpu.memory_space<vmem>>, vector<256x256xbf16>
    %cst_64 = arith.constant dense<0.000000e+00> : vector<1x256xf32>
    %190 = tpu.matmul %188, %189, %cst_64 {dimension_numbers = #tpu.dot_dimension_numbers<[1], [0], [0], [1], [0, 0, 1, 1], [], []>} : vector<1x256xbf16>, vector<256x256xbf16>, vector<1x256xf32> -> vector<1x256xf32>
    %c7 = arith.constant 7 : index
    %c0_65 = arith.constant 0 : index
    %191 = vector.load %arg4[%c7, %c0_65] : memref<11x512xf32, #tpu.memory_space<vmem>>, vector<1x256xf32>
    %192 = arith.addf %190, %191 : vector<1x256xf32>
    %c8 = arith.constant 8 : index
    %c0_66 = arith.constant 0 : index
    %193 = vector.load %arg4[%c8, %c0_66] : memref<11x512xf32, #tpu.memory_space<vmem>>, vector<1x256xf32>
    %c9 = arith.constant 9 : index
    %c0_67 = arith.constant 0 : index
    %194 = vector.load %arg4[%c9, %c0_67] : memref<11x512xf32, #tpu.memory_space<vmem>>, vector<1x256xf32>
    %cst_68 = arith.constant dense<0.000000e+00> : vector<1xf32>
    %195 = vector.multi_reduction <add>, %192, %cst_68 [1] : vector<1x256xf32> to vector<1xf32>
    %196 = vector.shape_cast %195 : vector<1xf32> to vector<1x1xf32>
    %cst_69 = arith.constant 2.560000e+02 : f32
    %197 = vector.broadcast %cst_69 : f32 to vector<1x1xf32>
    %198 = arith.divf %196, %197 : vector<1x1xf32>
    %199 = vector.broadcast %198 : vector<1x1xf32> to vector<1x256xf32>
    %200 = arith.subf %192, %199 : vector<1x256xf32>
    %201 = arith.mulf %200, %200 : vector<1x256xf32>
    %cst_70 = arith.constant dense<0.000000e+00> : vector<1xf32>
    %202 = vector.multi_reduction <add>, %201, %cst_70 [1] : vector<1x256xf32> to vector<1xf32>
    %203 = vector.shape_cast %202 : vector<1xf32> to vector<1x1xf32>
    %cst_71 = arith.constant 2.560000e+02 : f32
    %204 = vector.broadcast %cst_71 : f32 to vector<1x1xf32>
    %205 = arith.divf %203, %204 : vector<1x1xf32>
    %cst_72 = arith.constant 9.99999974E-6 : f32
    %206 = vector.broadcast %cst_72 : f32 to vector<1x1xf32>
    %207 = arith.addf %205, %206 : vector<1x1xf32>
    %208 = math.rsqrt %207 : vector<1x1xf32>
    %209 = vector.broadcast %208 : vector<1x1xf32> to vector<1x256xf32>
    %210 = arith.mulf %200, %209 : vector<1x256xf32>
    %211 = arith.mulf %210, %193 : vector<1x256xf32>
    %212 = arith.addf %211, %194 : vector<1x256xf32>
    %cst_73 = arith.constant 0.000000e+00 : f32
    %213 = vector.broadcast %cst_73 : f32 to vector<1x256xf32>
    %214 = arith.maximumf %212, %213 : vector<1x256xf32>
    %215 = arith.truncf %214 : vector<1x256xf32> to vector<1x256xbf16>
    %c0_74 = arith.constant 0 : index
    %c768 = arith.constant 768 : index
    %216 = vector.load %arg7[%c0_74, %c768] : memref<256x896xbf16, #tpu.memory_space<vmem>>, vector<256x128xbf16>
    %cst_75 = arith.constant dense<0.000000e+00> : vector<1x128xf32>
    %217 = tpu.matmul %215, %216, %cst_75 {dimension_numbers = #tpu.dot_dimension_numbers<[1], [0], [0], [1], [0, 0, 1, 1], [], []>} : vector<1x256xbf16>, vector<256x128xbf16>, vector<1x128xf32> -> vector<1x128xf32>
    %c10 = arith.constant 10 : index
    %c0_76 = arith.constant 0 : index
    %218 = vector.load %arg4[%c10, %c0_76] : memref<11x512xf32, #tpu.memory_space<vmem>>, vector<1x128xf32>
    %219 = arith.addf %217, %218 : vector<1x128xf32>
    %c0_77 = arith.constant 0 : index
    %c0_78 = arith.constant 0 : index
    %220 = vector.load %arg6[%c0_77, %c0_78] : memref<1x128xf32, #tpu.memory_space<vmem>>, vector<1x128xf32>
    tpu.vector_store %arg6[%c0_77, %c0_78], %219 {strides = array<i32>} : memref<1x128xf32, #tpu.memory_space<vmem>>, vector<1x128xf32>,
    return
  }
}

</mosaic_0001>

<llo_original>
// kernel: pallas_forward.1
$region0: #{pallas_forward.1}
  #allocation0 [shape = 'u32[]', space=smem, size = 0x4, offset = 0x4, fixed_abs, tag = 'smem constant byte address 0x4 - core index']
  #allocation1 [shape = 'u32[144,128]{1,0:T(1,128)}', space=vmem, size = 0x12000, scoped, tag = 'internal scratch']
  #allocation2 [shape = 'bf16[256,896]{1,0:T(8,128)(2,1)}', space=vmem, size = 0x70000, scoped, tag = 'scratch operand']
  #allocation3 [shape = 'f32[6,512]{1,0:T(8,128)}', space=vmem, size = 0x4000, scoped, tag = 'scratch operand']
  #allocation4 [shape = 's32[1]{0}', space=sflag, size = 0x4, scoped, tag = 'scratch operand']
  #allocation10 [shape = 's32[]', space=sflag, size = 0x4, offset = 0, fixed_abs, tag = 'sflag constant byte address 0x0 - dummy sync flag']
  #allocation11 [shape = 's32[]', space=sflag, size = 0x4, offset = 0, fixed_abs, tag = 'sflag constant byte address 0x0 - dummy sync flag']
  #allocation12 [shape = 'u32[]', space=smem, size = 0x4, offset = 0x44, fixed_abs, tag = 'smem constant byte address 0x44 - assertion arg 0']
  #allocation13 [shape = 'u32[]', space=smem, size = 0x4, offset = 0x48, fixed_abs, tag = 'smem constant byte address 0x48 - assertion arg 1']
  %s0 = inlined_call_operand.vmem [shape: bf16[6,35], index: 0, kind: input, shape index: {}]
  %s1 = inlined_call_operand.vmem [shape: bf16[1,256], index: 1, kind: input, shape index: {}]
  %s2 = inlined_call_operand.hbm [shape: bf16[35,512], index: 2, kind: input, shape index: {}]
  %s3 = inlined_call_operand.hbm [shape: bf16[128,768], index: 3, kind: input, shape index: {}]
  %s4 = inlined_call_operand.hbm [shape: f32[11,512], index: 4, kind: input, shape index: {}]
  %s5 = inlined_call_operand.hbm [shape: bf16[256,896], index: 5, kind: input, shape index: {}]
  %s6 = inlined_call_operand.vmem [shape: f32[1,128], index: 6, kind: output, shape index: {}]
  %s7 = sld [smem:[#allocation0]]
  $region46: #{pallas_forward.1} parent=0
    _
  %s9 = ssub.s32 1, %s7
  %s10 = scalar_select 0, %s9, %s7
  $region1: #{pallas_forward.1} parent=0
    #allocation5 [shape = 'u8[40960]{0}', space=vmem, size = 0xa000, scoped, tag = 'input window, operand 2, single buffered']
    #allocation6 [shape = 's32[1]{0}', space=sflag, size = 0x4, scoped, tag = 'scoped memory for pallas_forward.1']
    #allocation7 [shape = 'u8[196608]{0}', space=vmem, size = 0x30000, scoped, tag = 'input window, operand 3, single buffered']
    #allocation8 [shape = 's32[1]{0}', space=sflag, size = 0x4, scoped, tag = 'scoped memory for pallas_forward.1']
    #allocation9 [shape = 'u8[32768]{0}', space=vmem, size = 0x8000, scoped, tag = 'input window, operand 4, single buffered']
    %11 = vsyncpa [#allocation6], 0
    %12 = vsyncpa [#allocation8], 0
    // Predicated region
    $region2: #{pallas_forward.1} parent=1 // pred_check
      _
    $region3: #{pallas_forward.1} parent=1 // pred_check_branch
      %14 = sbr.rel (0) target = $region5
    $region4: #{pallas_forward.1} parent=1 // pred_region
      _
    $region5: #{pallas_forward.1} parent=1 // pred_fallthru
      _
    // Predicated region
    $region6: #{pallas_forward.1} parent=1 // pred_check
      _
    $region7: #{pallas_forward.1} parent=1 // pred_check_branch
      %16 = sbr.rel (0) target = $region9
    $region8: #{pallas_forward.1} parent=1 // pred_region
      _
    $region9: #{pallas_forward.1} parent=1 // pred_fallthru
      _
    // Predicated region
    $region10: #{pallas_forward.1} parent=1 // pred_check
      _
    $region11: #{pallas_forward.1} parent=1 // pred_check_branch
      %18 = sbr.rel (0) target = $region13
    $region12: #{pallas_forward.1} parent=1 // pred_region
      %s20 = ssub.s32 1280, 1280
      %21 = vsyncadd [#allocation6], %s20
      %s22 = sshll.u32 [#allocation5], 4
      %s23 = int_to_ptr.vmem [resolvable:$true] %s22
      %28 = dma.hbm_to_vmem [thread:$0]  %s2, 1280, %s23, [#allocation6], 256, 256, 16
    $region13: #{pallas_forward.1} parent=1 // pred_fallthru
      _
    // Predicated region
    $region14: #{pallas_forward.1} parent=1 // pred_check
      _
    $region15: #{pallas_forward.1} parent=1 // pred_check_branch
      %30 = sbr.rel (0) target = $region17
    $region16: #{pallas_forward.1} parent=1 // pred_region
      %s32 = ssub.s32 6144, 6144
      %33 = vsyncadd [#allocation8], %s32
      %s34 = sshll.u32 [#allocation7], 4
      %s35 = int_to_ptr.vmem [resolvable:$true] %s34
      %40 = dma.hbm_to_vmem [thread:$0]  %s3, 6144, %s35, [#allocation8], 384, 384, 24
    $region17: #{pallas_forward.1} parent=1 // pred_fallthru
      _
    // Predicated region
    $region18: #{pallas_forward.1} parent=1 // pred_check
      _
    $region19: #{pallas_forward.1} parent=1 // pred_check_branch
      %42 = sbr.rel (0) target = $region21
    $region20: #{pallas_forward.1} parent=1 // pred_region
      %s44 = ssub.s32 1024, 1024
      %45 = vsyncadd [#allocation8], %s44
      %s46 = sshll.u32 [#allocation9], 4
      %s47 = int_to_ptr.vmem [resolvable:$true] %s46
      %52 = dma.hbm_to_vmem [thread:$0]  %s4, 1024, %s47, [#allocation8], 512, 512, 32
    $region21: #{pallas_forward.1} parent=1 // pred_fallthru
      _
    // Predicated region
    $region22: #{pallas_forward.1} parent=1 // pred_check
      _
    $region23: #{pallas_forward.1} parent=1 // pred_check_branch
      %54 = sbr.rel (0) target = $region25
    $region24: #{pallas_forward.1} parent=1 // pred_region
      %55 = dma.done [#allocation6], 1280
    $region25: #{pallas_forward.1} parent=1 // pred_fallthru
      _
    // Predicated region
    $region26: #{pallas_forward.1} parent=1 // pred_check
      _
    $region27: #{pallas_forward.1} parent=1 // pred_check_branch
      %57 = sbr.rel (0) target = $region29
    $region28: #{pallas_forward.1} parent=1 // pred_region
      %58 = dma.done [#allocation8], 6144
    $region29: #{pallas_forward.1} parent=1 // pred_fallthru
      _
    // Predicated region
    $region30: #{pallas_forward.1} parent=1 // pred_check
      _
    $region31: #{pallas_forward.1} parent=1 // pred_check_branch
      %60 = sbr.rel (0) target = $region33
    $region32: #{pallas_forward.1} parent=1 // pred_region
      %61 = dma.done [#allocation8], 1024
    $region33: #{pallas_forward.1} parent=1 // pred_fallthru
      _
    // Predicated region
    $region34: #{pallas_forward.1} parent=1 // pred_check
      _
    $region35: #{pallas_forward.1} parent=1 // pred_check_branch
      %64 = sbr.rel target = $region37
    $region36: #{pallas_forward.1} parent=1 // pred_region
      %65 = sst [smem:[#allocation12]] [#allocation11]
      %66 = sst [smem:[#allocation13]] [#allocation10]
    $region37: #{pallas_forward.1} parent=1 // pred_fallthru
      _
    %68 = shalt.err (0)
    %s70 = sshll.u32 [#allocation2], 4
    %s71 = int_to_ptr.vmem [resolvable:$true] %s70
    %73 = dma.hbm_to_vmem [thread:$0]  %s5, 14336, %s71, [#allocation4]
    %v74 = vld [vmem:[%s0] sm:$0x7]
    %v75 = vld [vmem:[#allocation5] sm:$0xff]
    %v76 = vld [vmem:[#allocation5 + $0x8] sm:$0xff]
    %v77 = vld [vmem:[#allocation5 + $0x10] sm:$0xff]
    %v78 = vld [vmem:[#allocation5 + $0x18] sm:$0xff]
    %v79 = vld [vmem:[#allocation5 + $0x20] sm:$0xff]
    %v80 = vld [vmem:[#allocation5 + $0x28] sm:$0xff]
    %v81 = vld [vmem:[#allocation5 + $0x30] sm:$0xff]
    %v82 = vld [vmem:[#allocation5 + $0x38] sm:$0xff]
    %v83 = vld [vmem:[#allocation5 + $0x40] sm:$0x33]
    %v84 = vld [vmem:[#allocation5 + $0x48] sm:$0x33]
    %v85 = vld [vmem:[#allocation9] ss:$8 sm:$0xf]
    %v87 = vlaneseq
    %v88 = vshrl.u32 %v87, 7
    %v89 = vsub.s32 0, %v88
    %v90 = vrot.slane %v85, %v89
    %v91 = vlaneseq
    %v92 = vshrl.u32 %v91, 7
    %v93 = vsub.s32 1, %v92
    %v94 = vrot.slane %v85, %v93
    %v95 = vlaneseq
    %v96 = vshrl.u32 %v95, 7
    %v97 = vsub.s32 2, %v96
    %v98 = vrot.slane %v85, %v97
    %v99 = vlaneseq
    %v100 = vshrl.u32 %v99, 7
    %v101 = vsub.s32 3, %v100
    %v102 = vrot.slane %v85, %v101
    %v117 = vunpack.c.l.b16 %v75
    %v118 = vunpack.c.h.b16 %v75
    %v119 = vunpack.c.l.b16 %v76
    %v120 = vunpack.c.h.b16 %v76
    %v121 = vunpack.c.l.b16 %v77
    %v122 = vunpack.c.h.b16 %v77
    %v123 = vunpack.c.l.b16 %v78
    %v124 = vunpack.c.h.b16 %v78
    %v125 = vunpack.c.l.b16 %v79
    %v126 = vunpack.c.h.b16 %v79
    %v127 = vunpack.c.l.b16 %v80
    %v128 = vunpack.c.h.b16 %v80
    %v129 = vunpack.c.l.b16 %v81
    %v130 = vunpack.c.h.b16 %v81
    %v131 = vunpack.c.l.b16 %v82
    %v132 = vunpack.c.h.b16 %v82
    %v133 = vunpack.c.l.b16 %v83
    %v134 = vunpack.c.h.b16 %v83
    %v135 = vunpack.c.l.b16 %v84
    %v136 = vunpack.c.h.b16 %v84
    %v137 = vpack.c.b16 %v121, %v117
    %v138 = vpack.c.b16 %v122, %v118
    %v139 = vpack.c.b16 %v123, %v119
    %v140 = vpack.c.b16 %v124, %v120
    %v141 = vpack.c.b16 %v129, %v125
    %v142 = vpack.c.b16 %v130, %v126
    %v143 = vpack.c.b16 %v131, %v127
    %v144 = vpack.c.b16 %v132, %v128
    %v145 = vpack.c.b16 %v133, %v133
    %v146 = vpack.c.b16 %v134, %v134
    %v147 = vpack.c.b16 %v135, %v135
    %v148 = vpack.c.b16 %v136, %v136
    %vm157 = vcmask 285696
    %v159 = vsel %vm157, %v74, 0
    %vm161 = vcmask 1040384
    %vm162 = vcmask 1041408
    %v163 = vsel %vm161, 4294967295, 65535
    %v164 = vsel %vm162, %v163, 0
    %v166 = vand.u32 %v145, %v164
    %v169 = vand.u32 %v146, %v164
    %v172 = vand.u32 %v147, %v164
    %v175 = vand.u32 %v148, %v164
    %177 = vmatprep.subr.bf16.mxu0 0
    %178 = vmatpush1.bf16.msra.mxu0 0
    %179 = vmatprep.subr.bf16.mxu0 0
    %180 = vmatpush1.bf16.msra.mxu0 0
    %181 = vmatprep.subr.bf16.mxu0 0
    %182 = vmatpush1.bf16.msra.mxu0 0
    %183 = vmatprep.subr.bf16.mxu0 0
    %184 = vmatpush1.bf16.msra.mxu0 0
    %185 = vmatprep.subr.bf16.mxu0 0
    %186 = vmatpush1.bf16.msra.mxu0 0
    %187 = vmatprep.subr.bf16.mxu0 %v169
    %188 = vmatpush1.bf16.msra.mxu0 %v166
    %189 = vmatprep.subr.bf16.mxu0 %v142
    %190 = vmatpush1.bf16.msra.mxu0 %v141
    %191 = vmatprep.subr.bf16.mxu0 %v138
    %192 = vmatpush1.bf16.msra.mxu0 %v137
    %193 = vmatprep.subr.bf16.mxu0 0
    %194 = vmatpush2.bf16.msra.mxu0 0
    %195 = vmatprep.subr.bf16.mxu0 0
    %196 = vmatpush2.bf16.msra.mxu0 0
    %197 = vmatprep.subr.bf16.mxu0 0
    %198 = vmatpush2.bf16.msra.mxu0 0
    %199 = vmatprep.subr.bf16.mxu0 0
    %200 = vmatpush2.bf16.msra.mxu0 0
    %201 = vmatprep.subr.bf16.mxu0 0
    %202 = vmatpush2.bf16.msra.mxu0 0
    %203 = vmatprep.subr.bf16.mxu0 0
    %204 = vmatpush2.bf16.msra.mxu0 0
    %205 = vmatprep.subr.bf16.mxu0 0
    %206 = vmatpush2.bf16.msra.mxu0 0
    %207 = vmatprep.subr.bf16.mxu0 0
    %208 = vmatpush2.bf16.msra.mxu0 0
    %209 = vmatprep.mubr.bf16.mxu0 0
    %210 = vmatmul.mubr.bf16.gmra.mxu0 %v159
    %v211 = vpop.f32.mrf.mxu0
    %v212 = vadd.f32 %v90, %v211
    %v213 = vpop.f32.mrf.mxu0
    %v214 = vadd.f32 %v94, %v213
    %v215 = vpop.f32.mrf.mxu0
    %v216 = vpop.f32.mrf.mxu0
    %217 = vdwg.mxu0
    %218 = vmatprep.subr.bf16.mxu0 0
    %219 = vmatpush1.bf16.msra.mxu0 0
    %220 = vmatprep.subr.bf16.mxu0 0
    %221 = vmatpush1.bf16.msra.mxu0 0
    %222 = vmatprep.subr.bf16.mxu0 0
    %223 = vmatpush1.bf16.msra.mxu0 0
    %224 = vmatprep.subr.bf16.mxu0 0
    %225 = vmatpush1.bf16.msra.mxu0 0
    %226 = vmatprep.subr.bf16.mxu0 0
    %227 = vmatpush1.bf16.msra.mxu0 0
    %228 = vmatprep.subr.bf16.mxu0 %v175
    %229 = vmatpush1.bf16.msra.mxu0 %v172
    %230 = vmatprep.subr.bf16.mxu0 %v144
    %231 = vmatpush1.bf16.msra.mxu0 %v143
    %232 = vmatprep.subr.bf16.mxu0 %v140
    %233 = vmatpush1.bf16.msra.mxu0 %v139
    %234 = vmatprep.subr.bf16.mxu0 0
    %235 = vmatpush2.bf16.msra.mxu0 0
    %236 = vmatprep.subr.bf16.mxu0 0
    %237 = vmatpush2.bf16.msra.mxu0 0
    %238 = vmatprep.subr.bf16.mxu0 0
    %239 = vmatpush2.bf16.msra.mxu0 0
    %240 = vmatprep.subr.bf16.mxu0 0
    %241 = vmatpush2.bf16.msra.mxu0 0
    %242 = vmatprep.subr.bf16.mxu0 0
    %243 = vmatpush2.bf16.msra.mxu0 0
    %244 = vmatprep.subr.bf16.mxu0 0
    %245 = vmatpush2.bf16.msra.mxu0 0
    %246 = vmatprep.subr.bf16.mxu0 0
    %247 = vmatpush2.bf16.msra.mxu0 0
    %248 = vmatprep.subr.bf16.mxu0 0
    %249 = vmatpush2.bf16.msra.mxu0 0
    %250 = vmatprep.mubr.bf16.mxu0 0
    %251 = vmatmul.mubr.bf16.gmra.mxu0 %v159
    %v252 = vpop.f32.mrf.mxu0
    %v253 = vadd.f32 %v98, %v252
    %v254 = vpop.f32.mrf.mxu0
    %v255 = vadd.f32 %v102, %v254
    %v256 = vpop.f32.mrf.mxu0
    %v257 = vpop.f32.mrf.mxu0
    %258 = vdwg.mxu0
    %259 = vst [vmem:[#allocation3] sm:$0x3f] %v212
    %260 = vst [vmem:[#allocation3 + $0x8] sm:$0x3f] %v214
    %261 = vst [vmem:[#allocation3 + $0x10] sm:$0x3f] %v253
    %262 = vst [vmem:[#allocation3 + $0x18] sm:$0x3f] %v255
    %v263 = vld [vmem:[#allocation7] sm:$0xff]
    %v264 = vld [vmem:[#allocation7 + $0x8] sm:$0xff]
    %v265 = vld [vmem:[#allocation7 + $0x18] sm:$0xff]
    %v266 = vld [vmem:[#allocation7 + $0x20] sm:$0xff]
    %v267 = vld [vmem:[#allocation7 + $0x30] sm:$0xff]
    %v268 = vld [vmem:[#allocation7 + $0x38] sm:$0xff]
    %v269 = vld [vmem:[#allocation7 + $0x48] sm:$0xff]
    %v270 = vld [vmem:[#allocation7 + $0x50] sm:$0xff]
    %v271 = vld [vmem:[#allocation7 + $0x60] sm:$0xff]
    %v272 = vld [vmem:[#allocation7 + $0x68] sm:$0xff]
    %v273 = vld [vmem:[#allocation7 + $0x78] sm:$0xff]
    %v274 = vld [vmem:[#allocation7 + $0x80] sm:$0xff]
    %v275 = vld [vmem:[#allocation7 + $0x90] sm:$0xff]
    %v276 = vld [vmem:[#allocation7 + $0x98] sm:$0xff]
    %v277 = vld [vmem:[#allocation7 + $0xa8] sm:$0xff]
    %v278 = vld [vmem:[#allocation7 + $0xb0] sm:$0xff]
    %v279 = vld [vmem:[#allocation7 + $0xc0] sm:$0xff]
    %v280 = vld [vmem:[#allocation7 + $0xc8] sm:$0xff]
    %v281 = vld [vmem:[#allocation7 + $0xd8] sm:$0xff]
    %v282 = vld [vmem:[#allocation7 + $0xe0] sm:$0xff]
    %v283 = vld [vmem:[#allocation7 + $0xf0] sm:$0xff]
    %v284 = vld [vmem:[#allocation7 + $0xf8] sm:$0xff]
    %v285 = vld [vmem:[#allocation7 + $0x108] sm:$0xff]
    %v286 = vld [vmem:[#allocation7 + $0x110] sm:$0xff]
    %v287 = vld [vmem:[#allocation7 + $0x120] sm:$0xff]
    %v288 = vld [vmem:[#allocation7 + $0x128] sm:$0xff]
    %v289 = vld [vmem:[#allocation7 + $0x138] sm:$0xff]
    %v290 = vld [vmem:[#allocation7 + $0x140] sm:$0xff]
    %v291 = vld [vmem:[#allocation7 + $0x150] sm:$0xff]
    %v292 = vld [vmem:[#allocation7 + $0x158] sm:$0xff]
    %v293 = vld [vmem:[#allocation7 + $0x168] sm:$0xff]
    %v294 = vld [vmem:[#allocation7 + $0x170] sm:$0xff]
    %v295 = vld [vmem:[#allocation3] ss:$8 sm:$0xf]
    %v328 = vunpack.c.l.b16 %v263
    %v329 = vunpack.c.h.b16 %v263
    %v330 = vunpack.c.l.b16 %v264
    %v331 = vunpack.c.h.b16 %v264
    %v332 = vunpack.c.l.b16 %v265
    %v333 = vunpack.c.h.b16 %v265
    %v334 = vunpack.c.l.b16 %v266
    %v335 = vunpack.c.h.b16 %v266
    %v336 = vunpack.c.l.b16 %v267
    %v337 = vunpack.c.h.b16 %v267
    %v338 = vunpack.c.l.b16 %v268
    %v339 = vunpack.c.h.b16 %v268
    %v340 = vunpack.c.l.b16 %v269
    %v341 = vunpack.c.h.b16 %v269
    %v342 = vunpack.c.l.b16 %v270
    %v343 = vunpack.c.h.b16 %v270
    %v344 = vunpack.c.l.b16 %v271
    %v345 = vunpack.c.h.b16 %v271
    %v346 = vunpack.c.l.b16 %v272
    %v347 = vunpack.c.h.b16 %v272
    %v348 = vunpack.c.l.b16 %v273
    %v349 = vunpack.c.h.b16 %v273
    %v350 = vunpack.c.l.b16 %v274
    %v351 = vunpack.c.h.b16 %v274
    %v352 = vunpack.c.l.b16 %v275
    %v353 = vunpack.c.h.b16 %v275
    %v354 = vunpack.c.l.b16 %v276
    %v355 = vunpack.c.h.b16 %v276
    %v356 = vunpack.c.l.b16 %v277
    %v357 = vunpack.c.h.b16 %v277
    %v358 = vunpack.c.l.b16 %v278
    %v359 = vunpack.c.h.b16 %v278
    %v360 = vunpack.c.l.b16 %v279
    %v361 = vunpack.c.h.b16 %v279
    %v362 = vunpack.c.l.b16 %v280
    %v363 = vunpack.c.h.b16 %v280
    %v364 = vunpack.c.l.b16 %v281
    %v365 = vunpack.c.h.b16 %v281
    %v366 = vunpack.c.l.b16 %v282
    %v367 = vunpack.c.h.b16 %v282
    %v368 = vunpack.c.l.b16 %v283
    %v369 = vunpack.c.h.b16 %v283
    %v370 = vunpack.c.l.b16 %v284
    %v371 = vunpack.c.h.b16 %v284
    %v372 = vunpack.c.l.b16 %v285
    %v373 = vunpack.c.h.b16 %v285
    %v374 = vunpack.c.l.b16 %v286
    %v375 = vunpack.c.h.b16 %v286
    %v376 = vunpack.c.l.b16 %v287
    %v377 = vunpack.c.h.b16 %v287
    %v378 = vunpack.c.l.b16 %v288
    %v379 = vunpack.c.h.b16 %v288
    %v380 = vunpack.c.l.b16 %v289
    %v381 = vunpack.c.h.b16 %v289
    %v382 = vunpack.c.l.b16 %v290
    %v383 = vunpack.c.h.b16 %v290
    %v384 = vunpack.c.l.b16 %v291
    %v385 = vunpack.c.h.b16 %v291
    %v386 = vunpack.c.l.b16 %v292
    %v387 = vunpack.c.h.b16 %v292
    %v388 = vunpack.c.l.b16 %v293
    %v389 = vunpack.c.h.b16 %v293
    %v390 = vunpack.c.l.b16 %v294
    %v391 = vunpack.c.h.b16 %v294
    %v392 = vpack.c.b16 %v332, %v328
    %v393 = vpack.c.b16 %v333, %v329
    %v394 = vpack.c.b16 %v334, %v330
    %v395 = vpack.c.b16 %v335, %v331
    %v396 = vpack.c.b16 %v340, %v336
    %v397 = vpack.c.b16 %v341, %v337
    %v398 = vpack.c.b16 %v342, %v338
    %v399 = vpack.c.b16 %v343, %v339
    %v400 = vpack.c.b16 %v348, %v344
    %v401 = vpack.c.b16 %v349, %v345
    %v402 = vpack.c.b16 %v350, %v346
    %v403 = vpack.c.b16 %v351, %v347
    %v404 = vpack.c.b16 %v356, %v352
    %v405 = vpack.c.b16 %v357, %v353
    %v406 = vpack.c.b16 %v358, %v354
    %v407 = vpack.c.b16 %v359, %v355
    %v408 = vpack.c.b16 %v364, %v360
    %v409 = vpack.c.b16 %v365, %v361
    %v410 = vpack.c.b16 %v366, %v362
    %v411 = vpack.c.b16 %v367, %v363
    %v412 = vpack.c.b16 %v372, %v368
    %v413 = vpack.c.b16 %v373, %v369
    %v414 = vpack.c.b16 %v374, %v370
    %v415 = vpack.c.b16 %v375, %v371
    %v416 = vpack.c.b16 %v380, %v376
    %v417 = vpack.c.b16 %v381, %v377
    %v418 = vpack.c.b16 %v382, %v378
    %v419 = vpack.c.b16 %v383, %v379
    %v420 = vpack.c.b16 %v388, %v384
    %v421 = vpack.c.b16 %v389, %v385
    %v422 = vpack.c.b16 %v390, %v386
    %v423 = vpack.c.b16 %v391, %v387
    %456 = vmatprep.subr.bf16.mxu0 %v421
    %457 = vmatpush1.bf16.msra.mxu0 %v420
    %458 = vmatprep.subr.bf16.mxu0 %v417
    %459 = vmatpush1.bf16.msra.mxu0 %v416
    %460 = vmatprep.subr.bf16.mxu0 %v413
    %461 = vmatpush1.bf16.msra.mxu0 %v412
    %462 = vmatprep.subr.bf16.mxu0 %v409
    %463 = vmatpush1.bf16.msra.mxu0 %v408
    %464 = vmatprep.subr.bf16.mxu0 %v405
    %465 = vmatpush1.bf16.msra.mxu0 %v404
    %466 = vmatprep.subr.bf16.mxu0 %v401
    %467 = vmatpush1.bf16.msra.mxu0 %v400
    %468 = vmatprep.subr.bf16.mxu0 %v397
    %469 = vmatpush1.bf16.msra.mxu0 %v396
    %470 = vmatprep.subr.bf16.mxu0 %v393
    %471 = vmatpush1.bf16.msra.mxu0 %v392
    %472 = vmatprep.subr.bf16.mxu0 0
    %473 = vmatpush2.bf16.msra.mxu0 0
    %474 = vmatprep.subr.bf16.mxu0 0
    %475 = vmatpush2.bf16.msra.mxu0 0
    %476 = vmatprep.subr.bf16.mxu0 0
    %477 = vmatpush2.bf16.msra.mxu0 0
    %478 = vmatprep.subr.bf16.mxu0 0
    %479 = vmatpush2.bf16.msra.mxu0 0
    %480 = vmatprep.subr.bf16.mxu0 0
    %481 = vmatpush2.bf16.msra.mxu0 0
    %482 = vmatprep.subr.bf16.mxu0 0
    %483 = vmatpush2.bf16.msra.mxu0 0
    %484 = vmatprep.subr.bf16.mxu0 0
    %485 = vmatpush2.bf16.msra.mxu0 0
    %486 = vmatprep.subr.bf16.mxu0 0
    %487 = vmatpush2.bf16.msra.mxu0 0
    %488 = vmatprep.mubr.bf16.mxu0 0
    %489 = vmatmul.mubr.bf16.gmra.mxu0 0
    %v490 = vpop.f32.mrf.mxu0
    %v491 = vadd.f32 0.0, %v490
    %v492 = vpop.f32.mrf.mxu0
    %v493 = vadd.f32 0.0, %v492
    %v494 = vpop.f32.mrf.mxu0
    %v495 = vpop.f32.mrf.mxu0
    %496 = vdwg.mxu0
    %497 = vmatprep.subr.bf16.mxu0 %v423
    %498 = vmatpush1.bf16.msra.mxu0 %v422
    %499 = vmatprep.subr.bf16.mxu0 %v419
    %500 = vmatpush1.bf16.msra.mxu0 %v418
    %501 = vmatprep.subr.bf16.mxu0 %v415
    %502 = vmatpush1.bf16.msra.mxu0 %v414
    %503 = vmatprep.subr.bf16.mxu0 %v411
    %504 = vmatpush1.bf16.msra.mxu0 %v410
    %505 = vmatprep.subr.bf16.mxu0 %v407
    %506 = vmatpush1.bf16.msra.mxu0 %v406
    %507 = vmatprep.subr.bf16.mxu0 %v403
    %508 = vmatpush1.bf16.msra.mxu0 %v402
    %509 = vmatprep.subr.bf16.mxu0 %v399
    %510 = vmatpush1.bf16.msra.mxu0 %v398
    %511 = vmatprep.subr.bf16.mxu0 %v395
    %512 = vmatpush1.bf16.msra.mxu0 %v394
    %513 = vmatprep.subr.bf16.mxu0 0
    %514 = vmatpush2.bf16.msra.mxu0 0
    %515 = vmatprep.subr.bf16.mxu0 0
    %516 = vmatpush2.bf16.msra.mxu0 0
    %517 = vmatprep.subr.bf16.mxu0 0
    %518 = vmatpush2.bf16.msra.mxu0 0
    %519 = vmatprep.subr.bf16.mxu0 0
    %520 = vmatpush2.bf16.msra.mxu0 0
    %521 = vmatprep.subr.bf16.mxu0 0
    %522 = vmatpush2.bf16.msra.mxu0 0
    %523 = vmatprep.subr.bf16.mxu0 0
    %524 = vmatpush2.bf16.msra.mxu0 0
    %525 = vmatprep.subr.bf16.mxu0 0
    %526 = vmatpush2.bf16.msra.mxu0 0
    %527 = vmatprep.subr.bf16.mxu0 0
    %528 = vmatpush2.bf16.msra.mxu0 0
    %529 = vmatprep.mubr.bf16.mxu0 0
    %530 = vmatmul.mubr.bf16.gmra.mxu0 0
    %v531 = vpop.f32.mrf.mxu0
    %v532 = vadd.f32 0.0, %v531
    %v533 = vpop.f32.mrf.mxu0
    %v534 = vadd.f32 0.0, %v533
    %v535 = vpop.f32.mrf.mxu0
    %v536 = vpop.f32.mrf.mxu0
    %537 = vdwg.mxu0
    %v542 = vcombine.low %v491, %v493
    %v543 = vcombine.low %v532, %v534
    %v545 = vunpack.c.l.s4 1966171168
    %v546 = vunpack.c.0.s8 %v545
    %v547 = vlaneseq
    %v548 = vshrl.u32 %v547, 7
    %v549 = vsub.s32 %v546, %v548
    %v550 = vrot.slane %v542, %v549
    %v552 = vunpack.c.l.s4 1966171168
    %v553 = vunpack.c.0.s8 %v552
    %v554 = vlaneseq
    %v555 = vshrl.u32 %v554, 7
    %v556 = vsub.s32 %v553, %v555
    %v557 = vrot.slane %v543, %v556
    %v558 = vcombine.low %v550, %v557
    %v560 = vunpack.c.l.s4 1966171168
    %v561 = vunpack.c.0.s8 %v560
    %v562 = vlaneseq
    %v563 = vshrl.u32 %v562, 7
    %v564 = vsub.s32 %v561, %v563
    %v565 = vrot.slane %v558, %v564
    %v567 = vadd.f32 %v295, %v565
    %v568 = vxor.u32 %v567, 2147483648
    %v569 = vmul.f32 %v568, 1.442695
    %v570 = vpow.pop %v569
    %v571 = vadd.f32 %v570, 1.0
    %v572 = vrcp.pop %v571
    %v573 = vmul.f32 1.0, %v572
    %v575 = vrot.slane %v567, 3
    %v577 = vtanh.pop %v575
    %v579 = vrot.slane %v573, 1
    %v581 = vmul.f32 %v579, 0.0
    %v582 = vmul.f32 %v573, %v577
    %v583 = vadd.f32 %v581, %v582
    %v584 = vtanh.pop %v583
    %v585 = vrot.slane %v573, 2
    %v587 = vmul.f32 %v585, %v584
    %s588 = scalar_lea.vmem [#allocation3], 1
    %v589 = vld [vmem:[%s588] ss:$8 sm:$0xf]
    %v590 = vpack.c.bf16 %v587, %v587
    %591 = vmatprep.subr.bf16.mxu0 %v421
    %592 = vmatpush1.bf16.msra.mxu0 %v420
    %593 = vmatprep.subr.bf16.mxu0 %v417
    %594 = vmatpush1.bf16.msra.mxu0 %v416
    %595 = vmatprep.subr.bf16.mxu0 %v413
    %596 = vmatpush1.bf16.msra.mxu0 %v412
    %597 = vmatprep.subr.bf16.mxu0 %v409
    %598 = vmatpush1.bf16.msra.mxu0 %v408
    %599 = vmatprep.subr.bf16.mxu0 %v405
    %600 = vmatpush1.bf16.msra.mxu0 %v404
    %601 = vmatprep.subr.bf16.mxu0 %v401
    %602 = vmatpush1.bf16.msra.mxu0 %v400
    %603 = vmatprep.subr.bf16.mxu0 %v397
    %604 = vmatpush1.bf16.msra.mxu0 %v396
    %605 = vmatprep.subr.bf16.mxu0 %v393
    %606 = vmatpush1.bf16.msra.mxu0 %v392
    %607 = vmatprep.subr.bf16.mxu0 0
    %608 = vmatpush2.bf16.msra.mxu0 0
    %609 = vmatprep.subr.bf16.mxu0 0
    %610 = vmatpush2.bf16.msra.mxu0 0
    %611 = vmatprep.subr.bf16.mxu0 0
    %612 = vmatpush2.bf16.msra.mxu0 0
    %613 = vmatprep.subr.bf16.mxu0 0
    %614 = vmatpush2.bf16.msra.mxu0 0
    %615 = vmatprep.subr.bf16.mxu0 0
    %616 = vmatpush2.bf16.msra.mxu0 0
    %617 = vmatprep.subr.bf16.mxu0 0
    %618 = vmatpush2.bf16.msra.mxu0 0
    %619 = vmatprep.subr.bf16.mxu0 0
    %620 = vmatpush2.bf16.msra.mxu0 0
    %621 = vmatprep.subr.bf16.mxu0 0
    %622 = vmatpush2.bf16.msra.mxu0 0
    %623 = vmatprep.mubr.bf16.mxu0 0
    %624 = vmatmul.mubr.bf16.gmra.mxu0 %v590
    %v625 = vpop.f32.mrf.mxu0
    %v626 = vadd.f32 0.0, %v625
    %v627 = vpop.f32.mrf.mxu0
    %v628 = vadd.f32 0.0, %v627
    %v629 = vpop.f32.mrf.mxu0
    %v630 = vpop.f32.mrf.mxu0
    %631 = vdwg.mxu0
    %632 = vmatprep.subr.bf16.mxu0 %v423
    %633 = vmatpush1.bf16.msra.mxu0 %v422
    %634 = vmatprep.subr.bf16.mxu0 %v419
    %635 = vmatpush1.bf16.msra.mxu0 %v418
    %636 = vmatprep.subr.bf16.mxu0 %v415
    %637 = vmatpush1.bf16.msra.mxu0 %v414
    %638 = vmatprep.subr.bf16.mxu0 %v411
    %639 = vmatpush1.bf16.msra.mxu0 %v410
    %640 = vmatprep.subr.bf16.mxu0 %v407
    %641 = vmatpush1.bf16.msra.mxu0 %v406
    %642 = vmatprep.subr.bf16.mxu0 %v403
    %643 = vmatpush1.bf16.msra.mxu0 %v402
    %644 = vmatprep.subr.bf16.mxu0 %v399
    %645 = vmatpush1.bf16.msra.mxu0 %v398
    %646 = vmatprep.subr.bf16.mxu0 %v395
    %647 = vmatpush1.bf16.msra.mxu0 %v394
    %648 = vmatprep.subr.bf16.mxu0 0
    %649 = vmatpush2.bf16.msra.mxu0 0
    %650 = vmatprep.subr.bf16.mxu0 0
    %651 = vmatpush2.bf16.msra.mxu0 0
    %652 = vmatprep.subr.bf16.mxu0 0
    %653 = vmatpush2.bf16.msra.mxu0 0
    %654 = vmatprep.subr.bf16.mxu0 0
    %655 = vmatpush2.bf16.msra.mxu0 0
    %656 = vmatprep.subr.bf16.mxu0 0
    %657 = vmatpush2.bf16.msra.mxu0 0
    %658 = vmatprep.subr.bf16.mxu0 0
    %659 = vmatpush2.bf16.msra.mxu0 0
    %660 = vmatprep.subr.bf16.mxu0 0
    %661 = vmatpush2.bf16.msra.mxu0 0
    %662 = vmatprep.subr.bf16.mxu0 0
    %663 = vmatpush2.bf16.msra.mxu0 0
    %664 = vmatprep.mubr.bf16.mxu0 0
    %665 = vmatmul.mubr.bf16.gmra.mxu0 %v590
    %v666 = vpop.f32.mrf.mxu0
    %v667 = vadd.f32 0.0, %v666
    %v668 = vpop.f32.mrf.mxu0
    %v669 = vadd.f32 0.0, %v668
    %v670 = vpop.f32.mrf.mxu0
    %v671 = vpop.f32.mrf.mxu0
    %672 = vdwg.mxu0
    %v677 = vcombine.low %v626, %v628
    %v678 = vcombine.low %v667, %v669
    %v680 = vunpack.c.l.s4 1966171168
    %v681 = vunpack.c.0.s8 %v680
    %v682 = vlaneseq
    %v683 = vshrl.u32 %v682, 7
    %v684 = vsub.s32 %v681, %v683
    %v685 = vrot.slane %v677, %v684
    %v687 = vunpack.c.l.s4 1966171168
    %v688 = vunpack.c.0.s8 %v687
    %v689 = vlaneseq
    %v690 = vshrl.u32 %v689, 7
    %v691 = vsub.s32 %v688, %v690
    %v692 = vrot.slane %v678, %v691
    %v693 = vcombine.low %v685, %v692
    %v695 = vunpack.c.l.s4 1966171168
    %v696 = vunpack.c.0.s8 %v695
    %v697 = vlaneseq
    %v698 = vshrl.u32 %v697, 7
    %v699 = vsub.s32 %v696, %v698
    %v700 = vrot.slane %v693, %v699
    %v702 = vadd.f32 %v589, %v700
    %v703 = vxor.u32 %v702, 2147483648
    %v704 = vmul.f32 %v703, 1.442695
    %v705 = vpow.pop %v704
    %v706 = vadd.f32 %v705, 1.0
    %v707 = vrcp.pop %v706
    %v708 = vmul.f32 1.0, %v707
    %v710 = vrot.slane %v702, 3
    %v712 = vtanh.pop %v710
    %v714 = vrot.slane %v708, 1
    %v716 = vmul.f32 %v714, %v583
    %v717 = vmul.f32 %v708, %v712
    %v718 = vadd.f32 %v716, %v717
    %v719 = vtanh.pop %v718
    %v720 = vrot.slane %v708, 2
    %v722 = vmul.f32 %v720, %v719
    %s723 = scalar_lea.vmem [#allocation3], 2
    %v724 = vld [vmem:[%s723] ss:$8 sm:$0xf]
    %v725 = vpack.c.bf16 %v722, %v722
    %726 = vmatprep.subr.bf16.mxu0 %v421
    %727 = vmatpush1.bf16.msra.mxu0 %v420
    %728 = vmatprep.subr.bf16.mxu0 %v417
    %729 = vmatpush1.bf16.msra.mxu0 %v416
    %730 = vmatprep.subr.bf16.mxu0 %v413
    %731 = vmatpush1.bf16.msra.mxu0 %v412
    %732 = vmatprep.subr.bf16.mxu0 %v409
    %733 = vmatpush1.bf16.msra.mxu0 %v408
    %734 = vmatprep.subr.bf16.mxu0 %v405
    %735 = vmatpush1.bf16.msra.mxu0 %v404
    %736 = vmatprep.subr.bf16.mxu0 %v401
    %737 = vmatpush1.bf16.msra.mxu0 %v400
    %738 = vmatprep.subr.bf16.mxu0 %v397
    %739 = vmatpush1.bf16.msra.mxu0 %v396
    %740 = vmatprep.subr.bf16.mxu0 %v393
    %741 = vmatpush1.bf16.msra.mxu0 %v392
    %742 = vmatprep.subr.bf16.mxu0 0
    %743 = vmatpush2.bf16.msra.mxu0 0
    %744 = vmatprep.subr.bf16.mxu0 0
    %745 = vmatpush2.bf16.msra.mxu0 0
    %746 = vmatprep.subr.bf16.mxu0 0
    %747 = vmatpush2.bf16.msra.mxu0 0
    %748 = vmatprep.subr.bf16.mxu0 0
    %749 = vmatpush2.bf16.msra.mxu0 0
    %750 = vmatprep.subr.bf16.mxu0 0
    %751 = vmatpush2.bf16.msra.mxu0 0
    %752 = vmatprep.subr.bf16.mxu0 0
    %753 = vmatpush2.bf16.msra.mxu0 0
    %754 = vmatprep.subr.bf16.mxu0 0
    %755 = vmatpush2.bf16.msra.mxu0 0
    %756 = vmatprep.subr.bf16.mxu0 0
    %757 = vmatpush2.bf16.msra.mxu0 0
    %758 = vmatprep.mubr.bf16.mxu0 0
    %759 = vmatmul.mubr.bf16.gmra.mxu0 %v725
    %v760 = vpop.f32.mrf.mxu0
    %v761 = vadd.f32 0.0, %v760
    %v762 = vpop.f32.mrf.mxu0
    %v763 = vadd.f32 0.0, %v762
    %v764 = vpop.f32.mrf.mxu0
    %v765 = vpop.f32.mrf.mxu0
    %766 = vdwg.mxu0
    %767 = vmatprep.subr.bf16.mxu0 %v423
    %768 = vmatpush1.bf16.msra.mxu0 %v422
    %769 = vmatprep.subr.bf16.mxu0 %v419
    %770 = vmatpush1.bf16.msra.mxu0 %v418
    %771 = vmatprep.subr.bf16.mxu0 %v415
    %772 = vmatpush1.bf16.msra.mxu0 %v414
    %773 = vmatprep.subr.bf16.mxu0 %v411
    %774 = vmatpush1.bf16.msra.mxu0 %v410
    %775 = vmatprep.subr.bf16.mxu0 %v407
    %776 = vmatpush1.bf16.msra.mxu0 %v406
    %777 = vmatprep.subr.bf16.mxu0 %v403
    %778 = vmatpush1.bf16.msra.mxu0 %v402
    %779 = vmatprep.subr.bf16.mxu0 %v399
    %780 = vmatpush1.bf16.msra.mxu0 %v398
    %781 = vmatprep.subr.bf16.mxu0 %v395
    %782 = vmatpush1.bf16.msra.mxu0 %v394
    %783 = vmatprep.subr.bf16.mxu0 0
    %784 = vmatpush2.bf16.msra.mxu0 0
    %785 = vmatprep.subr.bf16.mxu0 0
    %786 = vmatpush2.bf16.msra.mxu0 0
    %787 = vmatprep.subr.bf16.mxu0 0
    %788 = vmatpush2.bf16.msra.mxu0 0
    %789 = vmatprep.subr.bf16.mxu0 0
    %790 = vmatpush2.bf16.msra.mxu0 0
    %791 = vmatprep.subr.bf16.mxu0 0
    %792 = vmatpush2.bf16.msra.mxu0 0
    %793 = vmatprep.subr.bf16.mxu0 0
    %794 = vmatpush2.bf16.msra.mxu0 0
    %795 = vmatprep.subr.bf16.mxu0 0
    %796 = vmatpush2.bf16.msra.mxu0 0
    %797 = vmatprep.subr.bf16.mxu0 0
    %798 = vmatpush2.bf16.msra.mxu0 0
    %799 = vmatprep.mubr.bf16.mxu0 0
    %800 = vmatmul.mubr.bf16.gmra.mxu0 %v725
    %v801 = vpop.f32.mrf.mxu0
    %v802 = vadd.f32 0.0, %v801
    %v803 = vpop.f32.mrf.mxu0
    %v804 = vadd.f32 0.0, %v803
    %v805 = vpop.f32.mrf.mxu0
    %v806 = vpop.f32.mrf.mxu0
    %807 = vdwg.mxu0
    %v812 = vcombine.low %v761, %v763
    %v813 = vcombine.low %v802, %v804
    %v815 = vunpack.c.l.s4 1966171168
    %v816 = vunpack.c.0.s8 %v815
    %v817 = vlaneseq
    %v818 = vshrl.u32 %v817, 7
    %v819 = vsub.s32 %v816, %v818
    %v820 = vrot.slane %v812, %v819
    %v822 = vunpack.c.l.s4 1966171168
    %v823 = vunpack.c.0.s8 %v822
    %v824 = vlaneseq
    %v825 = vshrl.u32 %v824, 7
    %v826 = vsub.s32 %v823, %v825
    %v827 = vrot.slane %v813, %v826
    %v828 = vcombine.low %v820, %v827
    %v830 = vunpack.c.l.s4 1966171168
    %v831 = vunpack.c.0.s8 %v830
    %v832 = vlaneseq
    %v833 = vshrl.u32 %v832, 7
    %v834 = vsub.s32 %v831, %v833
    %v835 = vrot.slane %v828, %v834
    %v837 = vadd.f32 %v724, %v835
    %v838 = vxor.u32 %v837, 2147483648
    %v839 = vmul.f32 %v838, 1.442695
    %v840 = vpow.pop %v839
    %v841 = vadd.f32 %v840, 1.0
    %v842 = vrcp.pop %v841
    %v843 = vmul.f32 1.0, %v842
    %v845 = vrot.slane %v837, 3
    %v847 = vtanh.pop %v845
    %v849 = vrot.slane %v843, 1
    %v851 = vmul.f32 %v849, %v718
    %v852 = vmul.f32 %v843, %v847
    %v853 = vadd.f32 %v851, %v852
    %v854 = vtanh.pop %v853
    %v855 = vrot.slane %v843, 2
    %v857 = vmul.f32 %v855, %v854
    %s858 = scalar_lea.vmem [#allocation3], 3
    %v859 = vld [vmem:[%s858] ss:$8 sm:$0xf]
    %v860 = vpack.c.bf16 %v857, %v857
    %861 = vmatprep.subr.bf16.mxu0 %v421
    %862 = vmatpush1.bf16.msra.mxu0 %v420
    %863 = vmatprep.subr.bf16.mxu0 %v417
    %864 = vmatpush1.bf16.msra.mxu0 %v416
    %865 = vmatprep.subr.bf16.mxu0 %v413
    %866 = vmatpush1.bf16.msra.mxu0 %v412
    %867 = vmatprep.subr.bf16.mxu0 %v409
    %868 = vmatpush1.bf16.msra.mxu0 %v408
    %869 = vmatprep.subr.bf16.mxu0 %v405
    %870 = vmatpush1.bf16.msra.mxu0 %v404
    %871 = vmatprep.subr.bf16.mxu0 %v401
    %872 = vmatpush1.bf16.msra.mxu0 %v400
    %873 = vmatprep.subr.bf16.mxu0 %v397
    %874 = vmatpush1.bf16.msra.mxu0 %v396
    %875 = vmatprep.subr.bf16.mxu0 %v393
    %876 = vmatpush1.bf16.msra.mxu0 %v392
    %877 = vmatprep.subr.bf16.mxu0 0
    %878 = vmatpush2.bf16.msra.mxu0 0
    %879 = vmatprep.subr.bf16.mxu0 0
    %880 = vmatpush2.bf16.msra.mxu0 0
    %881 = vmatprep.subr.bf16.mxu0 0
    %882 = vmatpush2.bf16.msra.mxu0 0
    %883 = vmatprep.subr.bf16.mxu0 0
    %884 = vmatpush2.bf16.msra.mxu0 0
    %885 = vmatprep.subr.bf16.mxu0 0
    %886 = vmatpush2.bf16.msra.mxu0 0
    %887 = vmatprep.subr.bf16.mxu0 0
    %888 = vmatpush2.bf16.msra.mxu0 0
    %889 = vmatprep.subr.bf16.mxu0 0
    %890 = vmatpush2.bf16.msra.mxu0 0
    %891 = vmatprep.subr.bf16.mxu0 0
    %892 = vmatpush2.bf16.msra.mxu0 0
    %893 = vmatprep.mubr.bf16.mxu0 0
    %894 = vmatmul.mubr.bf16.gmra.mxu0 %v860
    %v895 = vpop.f32.mrf.mxu0
    %v896 = vadd.f32 0.0, %v895
    %v897 = vpop.f32.mrf.mxu0
    %v898 = vadd.f32 0.0, %v897
    %v899 = vpop.f32.mrf.mxu0
    %v900 = vpop.f32.mrf.mxu0
    %901 = vdwg.mxu0
    %902 = vmatprep.subr.bf16.mxu0 %v423
    %903 = vmatpush1.bf16.msra.mxu0 %v422
    %904 = vmatprep.subr.bf16.mxu0 %v419
    %905 = vmatpush1.bf16.msra.mxu0 %v418
    %906 = vmatprep.subr.bf16.mxu0 %v415
    %907 = vmatpush1.bf16.msra.mxu0 %v414
    %908 = vmatprep.subr.bf16.mxu0 %v411
    %909 = vmatpush1.bf16.msra.mxu0 %v410
    %910 = vmatprep.subr.bf16.mxu0 %v407
    %911 = vmatpush1.bf16.msra.mxu0 %v406
    %912 = vmatprep.subr.bf16.mxu0 %v403
    %913 = vmatpush1.bf16.msra.mxu0 %v402
    %914 = vmatprep.subr.bf16.mxu0 %v399
    %915 = vmatpush1.bf16.msra.mxu0 %v398
    %916 = vmatprep.subr.bf16.mxu0 %v395
    %917 = vmatpush1.bf16.msra.mxu0 %v394
    %918 = vmatprep.subr.bf16.mxu0 0
    %919 = vmatpush2.bf16.msra.mxu0 0
    %920 = vmatprep.subr.bf16.mxu0 0
    %921 = vmatpush2.bf16.msra.mxu0 0
    %922 = vmatprep.subr.bf16.mxu0 0
    %923 = vmatpush2.bf16.msra.mxu0 0
    %924 = vmatprep.subr.bf16.mxu0 0
    %925 = vmatpush2.bf16.msra.mxu0 0
    %926 = vmatprep.subr.bf16.mxu0 0
    %927 = vmatpush2.bf16.msra.mxu0 0
    %928 = vmatprep.subr.bf16.mxu0 0
    %929 = vmatpush2.bf16.msra.mxu0 0
    %930 = vmatprep.subr.bf16.mxu0 0
    %931 = vmatpush2.bf16.msra.mxu0 0
    %932 = vmatprep.subr.bf16.mxu0 0
    %933 = vmatpush2.bf16.msra.mxu0 0
    %934 = vmatprep.mubr.bf16.mxu0 0
    %935 = vmatmul.mubr.bf16.gmra.mxu0 %v860
    %v936 = vpop.f32.mrf.mxu0
    %v937 = vadd.f32 0.0, %v936
    %v938 = vpop.f32.mrf.mxu0
    %v939 = vadd.f32 0.0, %v938
    %v940 = vpop.f32.mrf.mxu0
    %v941 = vpop.f32.mrf.mxu0
    %942 = vdwg.mxu0
    %v947 = vcombine.low %v896, %v898
    %v948 = vcombine.low %v937, %v939
    %v950 = vunpack.c.l.s4 1966171168
    %v951 = vunpack.c.0.s8 %v950
    %v952 = vlaneseq
    %v953 = vshrl.u32 %v952, 7
    %v954 = vsub.s32 %v951, %v953
    %v955 = vrot.slane %v947, %v954
    %v957 = vunpack.c.l.s4 1966171168
    %v958 = vunpack.c.0.s8 %v957
    %v959 = vlaneseq
    %v960 = vshrl.u32 %v959, 7
    %v961 = vsub.s32 %v958, %v960
    %v962 = vrot.slane %v948, %v961
    %v963 = vcombine.low %v955, %v962
    %v965 = vunpack.c.l.s4 1966171168
    %v966 = vunpack.c.0.s8 %v965
    %v967 = vlaneseq
    %v968 = vshrl.u32 %v967, 7
    %v969 = vsub.s32 %v966, %v968
    %v970 = vrot.slane %v963, %v969
    %v972 = vadd.f32 %v859, %v970
    %v973 = vxor.u32 %v972, 2147483648
    %v974 = vmul.f32 %v973, 1.442695
    %v975 = vpow.pop %v974
    %v976 = vadd.f32 %v975, 1.0
    %v977 = vrcp.pop %v976
    %v978 = vmul.f32 1.0, %v977
    %v980 = vrot.slane %v972, 3
    %v982 = vtanh.pop %v980
    %v984 = vrot.slane %v978, 1
    %v986 = vmul.f32 %v984, %v853
    %v987 = vmul.f32 %v978, %v982
    %v988 = vadd.f32 %v986, %v987
    %v989 = vtanh.pop %v988
    %v990 = vrot.slane %v978, 2
    %v992 = vmul.f32 %v990, %v989
    %s993 = scalar_lea.vmem [#allocation3], 4
    %v994 = vld [vmem:[%s993] ss:$8 sm:$0xf]
    %v995 = vpack.c.bf16 %v992, %v992
    %996 = vmatprep.subr.bf16.mxu0 %v421
    %997 = vmatpush1.bf16.msra.mxu0 %v420
    %998 = vmatprep.subr.bf16.mxu0 %v417
    %999 = vmatpush1.bf16.msra.mxu0 %v416
    %1000 = vmatprep.subr.bf16.mxu0 %v413
    %1001 = vmatpush1.bf16.msra.mxu0 %v412
    %1002 = vmatprep.subr.bf16.mxu0 %v409
    %1003 = vmatpush1.bf16.msra.mxu0 %v408
    %1004 = vmatprep.subr.bf16.mxu0 %v405
    %1005 = vmatpush1.bf16.msra.mxu0 %v404
    %1006 = vmatprep.subr.bf16.mxu0 %v401
    %1007 = vmatpush1.bf16.msra.mxu0 %v400
    %1008 = vmatprep.subr.bf16.mxu0 %v397
    %1009 = vmatpush1.bf16.msra.mxu0 %v396
    %1010 = vmatprep.subr.bf16.mxu0 %v393
    %1011 = vmatpush1.bf16.msra.mxu0 %v392
    %1012 = vmatprep.subr.bf16.mxu0 0
    %1013 = vmatpush2.bf16.msra.mxu0 0
    %1014 = vmatprep.subr.bf16.mxu0 0
    %1015 = vmatpush2.bf16.msra.mxu0 0
    %1016 = vmatprep.subr.bf16.mxu0 0
    %1017 = vmatpush2.bf16.msra.mxu0 0
    %1018 = vmatprep.subr.bf16.mxu0 0
    %1019 = vmatpush2.bf16.msra.mxu0 0
    %1020 = vmatprep.subr.bf16.mxu0 0
    %1021 = vmatpush2.bf16.msra.mxu0 0
    %1022 = vmatprep.subr.bf16.mxu0 0
    %1023 = vmatpush2.bf16.msra.mxu0 0
    %1024 = vmatprep.subr.bf16.mxu0 0
    %1025 = vmatpush2.bf16.msra.mxu0 0
    %1026 = vmatprep.subr.bf16.mxu0 0
    %1027 = vmatpush2.bf16.msra.mxu0 0
    %1028 = vmatprep.mubr.bf16.mxu0 0
    %1029 = vmatmul.mubr.bf16.gmra.mxu0 %v995
    %v1030 = vpop.f32.mrf.mxu0
    %v1031 = vadd.f32 0.0, %v1030
    %v1032 = vpop.f32.mrf.mxu0
    %v1033 = vadd.f32 0.0, %v1032
    %v1034 = vpop.f32.mrf.mxu0
    %v1035 = vpop.f32.mrf.mxu0
    %1036 = vdwg.mxu0
    %1037 = vmatprep.subr.bf16.mxu0 %v423
    %1038 = vmatpush1.bf16.msra.mxu0 %v422
    %1039 = vmatprep.subr.bf16.mxu0 %v419
    %1040 = vmatpush1.bf16.msra.mxu0 %v418
    %1041 = vmatprep.subr.bf16.mxu0 %v415
    %1042 = vmatpush1.bf16.msra.mxu0 %v414
    %1043 = vmatprep.subr.bf16.mxu0 %v411
    %1044 = vmatpush1.bf16.msra.mxu0 %v410
    %1045 = vmatprep.subr.bf16.mxu0 %v407
    %1046 = vmatpush1.bf16.msra.mxu0 %v406
    %1047 = vmatprep.subr.bf16.mxu0 %v403
    %1048 = vmatpush1.bf16.msra.mxu0 %v402
    %1049 = vmatprep.subr.bf16.mxu0 %v399
    %1050 = vmatpush1.bf16.msra.mxu0 %v398
    %1051 = vmatprep.subr.bf16.mxu0 %v395
    %1052 = vmatpush1.bf16.msra.mxu0 %v394
    %1053 = vmatprep.subr.bf16.mxu0 0
    %1054 = vmatpush2.bf16.msra.mxu0 0
    %1055 = vmatprep.subr.bf16.mxu0 0
    %1056 = vmatpush2.bf16.msra.mxu0 0
    %1057 = vmatprep.subr.bf16.mxu0 0
    %1058 = vmatpush2.bf16.msra.mxu0 0
    %1059 = vmatprep.subr.bf16.mxu0 0
    %1060 = vmatpush2.bf16.msra.mxu0 0
    %1061 = vmatprep.subr.bf16.mxu0 0
    %1062 = vmatpush2.bf16.msra.mxu0 0
    %1063 = vmatprep.subr.bf16.mxu0 0
    %1064 = vmatpush2.bf16.msra.mxu0 0
    %1065 = vmatprep.subr.bf16.mxu0 0
    %1066 = vmatpush2.bf16.msra.mxu0 0
    %1067 = vmatprep.subr.bf16.mxu0 0
    %1068 = vmatpush2.bf16.msra.mxu0 0
    %1069 = vmatprep.mubr.bf16.mxu0 0
    %1070 = vmatmul.mubr.bf16.gmra.mxu0 %v995
    %v1071 = vpop.f32.mrf.mxu0
    %v1072 = vadd.f32 0.0, %v1071
    %v1073 = vpop.f32.mrf.mxu0
    %v1074 = vadd.f32 0.0, %v1073
    %v1075 = vpop.f32.mrf.mxu0
    %v1076 = vpop.f32.mrf.mxu0
    %1077 = vdwg.mxu0
    %v1082 = vcombine.low %v1031, %v1033
    %v1083 = vcombine.low %v1072, %v1074
    %v1085 = vunpack.c.l.s4 1966171168
    %v1086 = vunpack.c.0.s8 %v1085
    %v1087 = vlaneseq
    %v1088 = vshrl.u32 %v1087, 7
    %v1089 = vsub.s32 %v1086, %v1088
    %v1090 = vrot.slane %v1082, %v1089
    %v1092 = vunpack.c.l.s4 1966171168
    %v1093 = vunpack.c.0.s8 %v1092
    %v1094 = vlaneseq
    %v1095 = vshrl.u32 %v1094, 7
    %v1096 = vsub.s32 %v1093, %v1095
    %v1097 = vrot.slane %v1083, %v1096
    %v1098 = vcombine.low %v1090, %v1097
    %v1100 = vunpack.c.l.s4 1966171168
    %v1101 = vunpack.c.0.s8 %v1100
    %v1102 = vlaneseq
    %v1103 = vshrl.u32 %v1102, 7
    %v1104 = vsub.s32 %v1101, %v1103
    %v1105 = vrot.slane %v1098, %v1104
    %v1107 = vadd.f32 %v994, %v1105
    %v1108 = vxor.u32 %v1107, 2147483648
    %v1109 = vmul.f32 %v1108, 1.442695
    %v1110 = vpow.pop %v1109
    %v1111 = vadd.f32 %v1110, 1.0
    %v1112 = vrcp.pop %v1111
    %v1113 = vmul.f32 1.0, %v1112
    %v1115 = vrot.slane %v1107, 3
    %v1117 = vtanh.pop %v1115
    %v1119 = vrot.slane %v1113, 1
    %v1121 = vmul.f32 %v1119, %v988
    %v1122 = vmul.f32 %v1113, %v1117
    %v1123 = vadd.f32 %v1121, %v1122
    %v1124 = vtanh.pop %v1123
    %v1125 = vrot.slane %v1113, 2
    %v1127 = vmul.f32 %v1125, %v1124
    %s1128 = scalar_lea.vmem [#allocation3], 5
    %v1129 = vld [vmem:[%s1128] ss:$8 sm:$0xf]
    %v1130 = vpack.c.bf16 %v1127, %v1127
    %1131 = vmatprep.subr.bf16.mxu0 %v421
    %1132 = vmatpush1.bf16.msra.mxu0 %v420
    %1133 = vmatprep.subr.bf16.mxu0 %v417
    %1134 = vmatpush1.bf16.msra.mxu0 %v416
    %1135 = vmatprep.subr.bf16.mxu0 %v413
    %1136 = vmatpush1.bf16.msra.mxu0 %v412
    %1137 = vmatprep.subr.bf16.mxu0 %v409
    %1138 = vmatpush1.bf16.msra.mxu0 %v408
    %1139 = vmatprep.subr.bf16.mxu0 %v405
    %1140 = vmatpush1.bf16.msra.mxu0 %v404
    %1141 = vmatprep.subr.bf16.mxu0 %v401
    %1142 = vmatpush1.bf16.msra.mxu0 %v400
    %1143 = vmatprep.subr.bf16.mxu0 %v397
    %1144 = vmatpush1.bf16.msra.mxu0 %v396
    %1145 = vmatprep.subr.bf16.mxu0 %v393
    %1146 = vmatpush1.bf16.msra.mxu0 %v392
    %1147 = vmatprep.subr.bf16.mxu0 0
    %1148 = vmatpush2.bf16.msra.mxu0 0
    %1149 = vmatprep.subr.bf16.mxu0 0
    %1150 = vmatpush2.bf16.msra.mxu0 0
    %1151 = vmatprep.subr.bf16.mxu0 0
    %1152 = vmatpush2.bf16.msra.mxu0 0
    %1153 = vmatprep.subr.bf16.mxu0 0
    %1154 = vmatpush2.bf16.msra.mxu0 0
    %1155 = vmatprep.subr.bf16.mxu0 0
    %1156 = vmatpush2.bf16.msra.mxu0 0
    %1157 = vmatprep.subr.bf16.mxu0 0
    %1158 = vmatpush2.bf16.msra.mxu0 0
    %1159 = vmatprep.subr.bf16.mxu0 0
    %1160 = vmatpush2.bf16.msra.mxu0 0
    %1161 = vmatprep.subr.bf16.mxu0 0
    %1162 = vmatpush2.bf16.msra.mxu0 0
    %1163 = vmatprep.mubr.bf16.mxu0 0
    %1164 = vmatmul.mubr.bf16.gmra.mxu0 %v1130
    %v1165 = vpop.f32.mrf.mxu0
    %v1166 = vadd.f32 0.0, %v1165
    %v1167 = vpop.f32.mrf.mxu0
    %v1168 = vadd.f32 0.0, %v1167
    %v1169 = vpop.f32.mrf.mxu0
    %v1170 = vpop.f32.mrf.mxu0
    %1171 = vdwg.mxu0
    %1172 = vmatprep.subr.bf16.mxu0 %v423
    %1173 = vmatpush1.bf16.msra.mxu0 %v422
    %1174 = vmatprep.subr.bf16.mxu0 %v419
    %1175 = vmatpush1.bf16.msra.mxu0 %v418
    %1176 = vmatprep.subr.bf16.mxu0 %v415
    %1177 = vmatpush1.bf16.msra.mxu0 %v414
    %1178 = vmatprep.subr.bf16.mxu0 %v411
    %1179 = vmatpush1.bf16.msra.mxu0 %v410
    %1180 = vmatprep.subr.bf16.mxu0 %v407
    %1181 = vmatpush1.bf16.msra.mxu0 %v406
    %1182 = vmatprep.subr.bf16.mxu0 %v403
    %1183 = vmatpush1.bf16.msra.mxu0 %v402
    %1184 = vmatprep.subr.bf16.mxu0 %v399
    %1185 = vmatpush1.bf16.msra.mxu0 %v398
    %1186 = vmatprep.subr.bf16.mxu0 %v395
    %1187 = vmatpush1.bf16.msra.mxu0 %v394
    %1188 = vmatprep.subr.bf16.mxu0 0
    %1189 = vmatpush2.bf16.msra.mxu0 0
    %1190 = vmatprep.subr.bf16.mxu0 0
    %1191 = vmatpush2.bf16.msra.mxu0 0
    %1192 = vmatprep.subr.bf16.mxu0 0
    %1193 = vmatpush2.bf16.msra.mxu0 0
    %1194 = vmatprep.subr.bf16.mxu0 0
    %1195 = vmatpush2.bf16.msra.mxu0 0
    %1196 = vmatprep.subr.bf16.mxu0 0
    %1197 = vmatpush2.bf16.msra.mxu0 0
    %1198 = vmatprep.subr.bf16.mxu0 0
    %1199 = vmatpush2.bf16.msra.mxu0 0
    %1200 = vmatprep.subr.bf16.mxu0 0
    %1201 = vmatpush2.bf16.msra.mxu0 0
    %1202 = vmatprep.subr.bf16.mxu0 0
    %1203 = vmatpush2.bf16.msra.mxu0 0
    %1204 = vmatprep.mubr.bf16.mxu0 0
    %1205 = vmatmul.mubr.bf16.gmra.mxu0 %v1130
    %v1206 = vpop.f32.mrf.mxu0
    %v1207 = vadd.f32 0.0, %v1206
    %v1208 = vpop.f32.mrf.mxu0
    %v1209 = vadd.f32 0.0, %v1208
    %v1210 = vpop.f32.mrf.mxu0
    %v1211 = vpop.f32.mrf.mxu0
    %1212 = vdwg.mxu0
    %v1217 = vcombine.low %v1166, %v1168
    %v1218 = vcombine.low %v1207, %v1209
    %v1220 = vunpack.c.l.s4 1966171168
    %v1221 = vunpack.c.0.s8 %v1220
    %v1222 = vlaneseq
    %v1223 = vshrl.u32 %v1222, 7
    %v1224 = vsub.s32 %v1221, %v1223
    %v1225 = vrot.slane %v1217, %v1224
    %v1227 = vunpack.c.l.s4 1966171168
    %v1228 = vunpack.c.0.s8 %v1227
    %v1229 = vlaneseq
    %v1230 = vshrl.u32 %v1229, 7
    %v1231 = vsub.s32 %v1228, %v1230
    %v1232 = vrot.slane %v1218, %v1231
    %v1233 = vcombine.low %v1225, %v1232
    %v1235 = vunpack.c.l.s4 1966171168
    %v1236 = vunpack.c.0.s8 %v1235
    %v1237 = vlaneseq
    %v1238 = vshrl.u32 %v1237, 7
    %v1239 = vsub.s32 %v1236, %v1238
    %v1240 = vrot.slane %v1233, %v1239
    %v1242 = vadd.f32 %v1129, %v1240
    %v1243 = vxor.u32 %v1242, 2147483648
    %v1244 = vmul.f32 %v1243, 1.442695
    %v1245 = vpow.pop %v1244
    %v1246 = vadd.f32 %v1245, 1.0
    %v1247 = vrcp.pop %v1246
    %v1248 = vmul.f32 1.0, %v1247
    %v1250 = vrot.slane %v1242, 3
    %v1252 = vtanh.pop %v1250
    %v1254 = vrot.slane %v1248, 1
    %v1256 = vmul.f32 %v1254, %v1123
    %v1257 = vmul.f32 %v1248, %v1252
    %v1258 = vadd.f32 %v1256, %v1257
    %v1259 = vtanh.pop %v1258
    %v1260 = vrot.slane %v1248, 2
    %v1262 = vmul.f32 %v1260, %v1259
    %s1263 = smul.u32 4, 32
    %s1264 = smul.u32 %s1263, 7
    %s1265 = sshll.u32 %s1264, 4
    %1266 = dma.done [#allocation4], %s1265
    %v1267 = vld [vmem:[#allocation7 + $0x10] sm:$0xff]
    %v1268 = vld [vmem:[#allocation7 + $0x28] sm:$0xff]
    %v1269 = vld [vmem:[#allocation7 + $0x40] sm:$0xff]
    %v1270 = vld [vmem:[#allocation7 + $0x58] sm:$0xff]
    %v1271 = vld [vmem:[#allocation7 + $0x70] sm:$0xff]
    %v1272 = vld [vmem:[#allocation7 + $0x88] sm:$0xff]
    %v1273 = vld [vmem:[#allocation7 + $0xa0] sm:$0xff]
    %v1274 = vld [vmem:[#allocation7 + $0xb8] sm:$0xff]
    %v1275 = vld [vmem:[#allocation7 + $0xd0] sm:$0xff]
    %v1276 = vld [vmem:[#allocation7 + $0xe8] sm:$0xff]
    %v1277 = vld [vmem:[#allocation7 + $0x100] sm:$0xff]
    %v1278 = vld [vmem:[#allocation7 + $0x118] sm:$0xff]
    %v1279 = vld [vmem:[#allocation7 + $0x130] sm:$0xff]
    %v1280 = vld [vmem:[#allocation7 + $0x148] sm:$0xff]
    %v1281 = vld [vmem:[#allocation7 + $0x160] sm:$0xff]
    %v1282 = vld [vmem:[#allocation7 + $0x178] sm:$0xff]
    %v1283 = vpack.c.bf16 %v1262, %v1262
    %v1284 = vld [vmem:[%s1] sm:$0x3]
    %v1285 = vld [vmem:[#allocation2] sm:$0xff]
    %v1286 = vld [vmem:[#allocation2 + $0x1c] sm:$0xff]
    %v1287 = vld [vmem:[#allocation2 + $0x38] sm:$0xff]
    %v1288 = vld [vmem:[#allocation2 + $0x54] sm:$0xff]
    %v1289 = vld [vmem:[#allocation2 + $0x70] sm:$0xff]
    %v1290 = vld [vmem:[#allocation2 + $0x8c] sm:$0xff]
    %v1291 = vld [vmem:[#allocation2 + $0xa8] sm:$0xff]
    %v1292 = vld [vmem:[#allocation2 + $0xc4] sm:$0xff]
    %v1293 = vld [vmem:[#allocation2 + $0xe0] sm:$0xff]
    %v1294 = vld [vmem:[#allocation2 + $0xfc] sm:$0xff]
    %v1295 = vld [vmem:[#allocation2 + $0x118] sm:$0xff]
    %v1296 = vld [vmem:[#allocation2 + $0x134] sm:$0xff]
    %v1297 = vld [vmem:[#allocation2 + $0x150] sm:$0xff]
    %v1298 = vld [vmem:[#allocation2 + $0x16c] sm:$0xff]
    %v1299 = vld [vmem:[#allocation2 + $0x188] sm:$0xff]
    %v1300 = vld [vmem:[#allocation2 + $0x1a4] sm:$0xff]
    %v1301 = vld [vmem:[#allocation2 + $0x1c0] sm:$0xff]
    %v1302 = vld [vmem:[#allocation2 + $0x1dc] sm:$0xff]
    %v1303 = vld [vmem:[#allocation2 + $0x1f8] sm:$0xff]
    %v1304 = vld [vmem:[#allocation2 + $0x214] sm:$0xff]
    %v1305 = vld [vmem:[#allocation2 + $0x230] sm:$0xff]
    %v1306 = vld [vmem:[#allocation2 + $0x24c] sm:$0xff]
    %v1307 = vld [vmem:[#allocation2 + $0x268] sm:$0xff]
    %v1308 = vld [vmem:[#allocation2 + $0x284] sm:$0xff]
    %v1309 = vld [vmem:[#allocation2 + $0x2a0] sm:$0xff]
    %v1310 = vld [vmem:[#allocation2 + $0x2bc] sm:$0xff]
    %v1311 = vld [vmem:[#allocation2 + $0x2d8] sm:$0xff]
    %v1312 = vld [vmem:[#allocation2 + $0x2f4] sm:$0xff]
    %v1313 = vld [vmem:[#allocation2 + $0x310] sm:$0xff]
    %v1314 = vld [vmem:[#allocation2 + $0x32c] sm:$0xff]
    %v1315 = vld [vmem:[#allocation2 + $0x348] sm:$0xff]
    %v1316 = vld [vmem:[#allocation2 + $0x364] sm:$0xff]
    %v1319 = vunpack.c.l.s4 1966171168
    %v1320 = vunpack.c.0.s8 %v1319
    %v1321 = vlaneseq
    %v1322 = vshrl.u32 %v1321, 7
    %v1323 = vsub.s32 %v1320, %v1322
    %v1324 = vrot.slane %v1284, %v1323
    %v1325 = vcombine.high %v1324, %v1324
    %v1327 = vunpack.c.l.s4 1966171168
    %v1328 = vunpack.c.0.s8 %v1327
    %v1329 = vlaneseq
    %v1330 = vshrl.u32 %v1329, 7
    %v1331 = vsub.s32 %v1328, %v1330
    %v1332 = vrot.slane %v1324, %v1331
    %v1334 = vunpack.c.l.s4 1966171168
    %v1335 = vunpack.c.0.s8 %v1334
    %v1336 = vlaneseq
    %v1337 = vshrl.u32 %v1336, 7
    %v1338 = vsub.s32 %v1335, %v1337
    %v1339 = vrot.slane %v1325, %v1338
    %v1374 = vunpack.c.l.b16 %v1285
    %v1375 = vunpack.c.h.b16 %v1285
    %v1376 = vunpack.c.l.b16 %v1286
    %v1377 = vunpack.c.h.b16 %v1286
    %v1378 = vunpack.c.l.b16 %v1287
    %v1379 = vunpack.c.h.b16 %v1287
    %v1380 = vunpack.c.l.b16 %v1288
    %v1381 = vunpack.c.h.b16 %v1288
    %v1382 = vunpack.c.l.b16 %v1289
    %v1383 = vunpack.c.h.b16 %v1289
    %v1384 = vunpack.c.l.b16 %v1290
    %v1385 = vunpack.c.h.b16 %v1290
    %v1386 = vunpack.c.l.b16 %v1291
    %v1387 = vunpack.c.h.b16 %v1291
    %v1388 = vunpack.c.l.b16 %v1292
    %v1389 = vunpack.c.h.b16 %v1292
    %v1390 = vunpack.c.l.b16 %v1293
    %v1391 = vunpack.c.h.b16 %v1293
    %v1392 = vunpack.c.l.b16 %v1294
    %v1393 = vunpack.c.h.b16 %v1294
    %v1394 = vunpack.c.l.b16 %v1295
    %v1395 = vunpack.c.h.b16 %v1295
    %v1396 = vunpack.c.l.b16 %v1296
    %v1397 = vunpack.c.h.b16 %v1296
    %v1398 = vunpack.c.l.b16 %v1297
    %v1399 = vunpack.c.h.b16 %v1297
    %v1400 = vunpack.c.l.b16 %v1298
    %v1401 = vunpack.c.h.b16 %v1298
    %v1402 = vunpack.c.l.b16 %v1299
    %v1403 = vunpack.c.h.b16 %v1299
    %v1404 = vunpack.c.l.b16 %v1300
    %v1405 = vunpack.c.h.b16 %v1300
    %v1406 = vunpack.c.l.b16 %v1301
    %v1407 = vunpack.c.h.b16 %v1301
    %v1408 = vunpack.c.l.b16 %v1302
    %v1409 = vunpack.c.h.b16 %v1302
    %v1410 = vunpack.c.l.b16 %v1303
    %v1411 = vunpack.c.h.b16 %v1303
    %v1412 = vunpack.c.l.b16 %v1304
    %v1413 = vunpack.c.h.b16 %v1304
    %v1414 = vunpack.c.l.b16 %v1305
    %v1415 = vunpack.c.h.b16 %v1305
    %v1416 = vunpack.c.l.b16 %v1306
    %v1417 = vunpack.c.h.b16 %v1306
    %v1418 = vunpack.c.l.b16 %v1307
    %v1419 = vunpack.c.h.b16 %v1307
    %v1420 = vunpack.c.l.b16 %v1308
    %v1421 = vunpack.c.h.b16 %v1308
    %v1422 = vunpack.c.l.b16 %v1309
    %v1423 = vunpack.c.h.b16 %v1309
    %v1424 = vunpack.c.l.b16 %v1310
    %v1425 = vunpack.c.h.b16 %v1310
    %v1426 = vunpack.c.l.b16 %v1311
    %v1427 = vunpack.c.h.b16 %v1311
    %v1428 = vunpack.c.l.b16 %v1312
    %v1429 = vunpack.c.h.b16 %v1312
    %v1430 = vunpack.c.l.b16 %v1313
    %v1431 = vunpack.c.h.b16 %v1313
    %v1432 = vunpack.c.l.b16 %v1314
    %v1433 = vunpack.c.h.b16 %v1314
    %v1434 = vunpack.c.l.b16 %v1315
    %v1435 = vunpack.c.h.b16 %v1315
    %v1436 = vunpack.c.l.b16 %v1316
    %v1437 = vunpack.c.h.b16 %v1316
    %v1438 = vpack.c.b16 %v1376, %v1374
    %v1439 = vpack.c.b16 %v1377, %v1375
    %v1440 = vpack.c.b16 %v1380, %v1378
    %v1441 = vpack.c.b16 %v1381, %v1379
    %v1442 = vpack.c.b16 %v1384, %v1382
    %v1443 = vpack.c.b16 %v1385, %v1383
    %v1444 = vpack.c.b16 %v1388, %v1386
    %v1445 = vpack.c.b16 %v1389, %v1387
    %v1446 = vpack.c.b16 %v1392, %v1390
    %v1447 = vpack.c.b16 %v1393, %v1391
    %v1448 = vpack.c.b16 %v1396, %v1394
    %v1449 = vpack.c.b16 %v1397, %v1395
    %v1450 = vpack.c.b16 %v1400, %v1398
    %v1451 = vpack.c.b16 %v1401, %v1399
    %v1452 = vpack.c.b16 %v1404, %v1402
    %v1453 = vpack.c.b16 %v1405, %v1403
    %v1454 = vpack.c.b16 %v1408, %v1406
    %v1455 = vpack.c.b16 %v1409, %v1407
    %v1456 = vpack.c.b16 %v1412, %v1410
    %v1457 = vpack.c.b16 %v1413, %v1411
    %v1458 = vpack.c.b16 %v1416, %v1414
    %v1459 = vpack.c.b16 %v1417, %v1415
    %v1460 = vpack.c.b16 %v1420, %v1418
    %v1461 = vpack.c.b16 %v1421, %v1419
    %v1462 = vpack.c.b16 %v1424, %v1422
    %v1463 = vpack.c.b16 %v1425, %v1423
    %v1464 = vpack.c.b16 %v1428, %v1426
    %v1465 = vpack.c.b16 %v1429, %v1427
    %v1466 = vpack.c.b16 %v1432, %v1430
    %v1467 = vpack.c.b16 %v1433, %v1431
    %v1468 = vpack.c.b16 %v1436, %v1434
    %v1469 = vpack.c.b16 %v1437, %v1435
    %1502 = vmatprep.subr.bf16.mxu0 %v1453
    %1503 = vmatpush1.bf16.msra.mxu0 %v1452
    %1504 = vmatprep.subr.bf16.mxu0 %v1451
    %1505 = vmatpush1.bf16.msra.mxu0 %v1450
    %1506 = vmatprep.subr.bf16.mxu0 %v1449
    %1507 = vmatpush1.bf16.msra.mxu0 %v1448
    %1508 = vmatprep.subr.bf16.mxu0 %v1447
    %1509 = vmatpush1.bf16.msra.mxu0 %v1446
    %1510 = vmatprep.subr.bf16.mxu0 %v1445
    %1511 = vmatpush1.bf16.msra.mxu0 %v1444
    %1512 = vmatprep.subr.bf16.mxu0 %v1443
    %1513 = vmatpush1.bf16.msra.mxu0 %v1442
    %1514 = vmatprep.subr.bf16.mxu0 %v1441
    %1515 = vmatpush1.bf16.msra.mxu0 %v1440
    %1516 = vmatprep.subr.bf16.mxu0 %v1439
    %1517 = vmatpush1.bf16.msra.mxu0 %v1438
    %1518 = vmatprep.subr.bf16.mxu0 %v1469
    %1519 = vmatpush2.bf16.msra.mxu0 %v1468
    %1520 = vmatprep.subr.bf16.mxu0 %v1467
    %1521 = vmatpush2.bf16.msra.mxu0 %v1466
    %1522 = vmatprep.subr.bf16.mxu0 %v1465
    %1523 = vmatpush2.bf16.msra.mxu0 %v1464
    %1524 = vmatprep.subr.bf16.mxu0 %v1463
    %1525 = vmatpush2.bf16.msra.mxu0 %v1462
    %1526 = vmatprep.subr.bf16.mxu0 %v1461
    %1527 = vmatpush2.bf16.msra.mxu0 %v1460
    %1528 = vmatprep.subr.bf16.mxu0 %v1459
    %1529 = vmatpush2.bf16.msra.mxu0 %v1458
    %1530 = vmatprep.subr.bf16.mxu0 %v1457
    %1531 = vmatpush2.bf16.msra.mxu0 %v1456
    %1532 = vmatprep.subr.bf16.mxu0 %v1455
    %1533 = vmatpush2.bf16.msra.mxu0 %v1454
    %1534 = vmatprep.mubr.bf16.mxu0 %v1339
    %1535 = vmatmul.mubr.bf16.gmra.mxu0 %v1332
    %v1536 = vpop.f32.mrf.mxu0
    %v1537 = vadd.f32 0.0, %v1536
    %v1538 = vpop.f32.mrf.mxu0
    %v1539 = vadd.f32 0.0, %v1538
    %v1540 = vpop.f32.mrf.mxu0
    %v1541 = vpop.f32.mrf.mxu0
    %1542 = vdwg.mxu0
    %v1559 = vunpack.c.l.b16 %v1267
    %v1560 = vunpack.c.h.b16 %v1267
    %v1561 = vunpack.c.l.b16 %v1268
    %v1562 = vunpack.c.h.b16 %v1268
    %v1563 = vunpack.c.l.b16 %v1269
    %v1564 = vunpack.c.h.b16 %v1269
    %v1565 = vunpack.c.l.b16 %v1270
    %v1566 = vunpack.c.h.b16 %v1270
    %v1567 = vunpack.c.l.b16 %v1271
    %v1568 = vunpack.c.h.b16 %v1271
    %v1569 = vunpack.c.l.b16 %v1272
    %v1570 = vunpack.c.h.b16 %v1272
    %v1571 = vunpack.c.l.b16 %v1273
    %v1572 = vunpack.c.h.b16 %v1273
    %v1573 = vunpack.c.l.b16 %v1274
    %v1574 = vunpack.c.h.b16 %v1274
    %v1575 = vunpack.c.l.b16 %v1275
    %v1576 = vunpack.c.h.b16 %v1275
    %v1577 = vunpack.c.l.b16 %v1276
    %v1578 = vunpack.c.h.b16 %v1276
    %v1579 = vunpack.c.l.b16 %v1277
    %v1580 = vunpack.c.h.b16 %v1277
    %v1581 = vunpack.c.l.b16 %v1278
    %v1582 = vunpack.c.h.b16 %v1278
    %v1583 = vunpack.c.l.b16 %v1279
    %v1584 = vunpack.c.h.b16 %v1279
    %v1585 = vunpack.c.l.b16 %v1280
    %v1586 = vunpack.c.h.b16 %v1280
    %v1587 = vunpack.c.l.b16 %v1281
    %v1588 = vunpack.c.h.b16 %v1281
    %v1589 = vunpack.c.l.b16 %v1282
    %v1590 = vunpack.c.h.b16 %v1282
    %v1591 = vpack.c.b16 %v1561, %v1559
    %v1592 = vpack.c.b16 %v1562, %v1560
    %v1593 = vpack.c.b16 %v1565, %v1563
    %v1594 = vpack.c.b16 %v1566, %v1564
    %v1595 = vpack.c.b16 %v1569, %v1567
    %v1596 = vpack.c.b16 %v1570, %v1568
    %v1597 = vpack.c.b16 %v1573, %v1571
    %v1598 = vpack.c.b16 %v1574, %v1572
    %v1599 = vpack.c.b16 %v1577, %v1575
    %v1600 = vpack.c.b16 %v1578, %v1576
    %v1601 = vpack.c.b16 %v1581, %v1579
    %v1602 = vpack.c.b16 %v1582, %v1580
    %v1603 = vpack.c.b16 %v1585, %v1583
    %v1604 = vpack.c.b16 %v1586, %v1584
    %v1605 = vpack.c.b16 %v1589, %v1587
    %v1606 = vpack.c.b16 %v1590, %v1588
    %1623 = vmatprep.subr.bf16.mxu0 %v1606
    %1624 = vmatpush1.bf16.msra.mxu0 %v1605
    %1625 = vmatprep.subr.bf16.mxu0 %v1604
    %1626 = vmatpush1.bf16.msra.mxu0 %v1603
    %1627 = vmatprep.subr.bf16.mxu0 %v1602
    %1628 = vmatpush1.bf16.msra.mxu0 %v1601
    %1629 = vmatprep.subr.bf16.mxu0 %v1600
    %1630 = vmatpush1.bf16.msra.mxu0 %v1599
    %1631 = vmatprep.subr.bf16.mxu0 %v1598
    %1632 = vmatpush1.bf16.msra.mxu0 %v1597
    %1633 = vmatprep.subr.bf16.mxu0 %v1596
    %1634 = vmatpush1.bf16.msra.mxu0 %v1595
    %1635 = vmatprep.subr.bf16.mxu0 %v1594
    %1636 = vmatpush1.bf16.msra.mxu0 %v1593
    %1637 = vmatprep.subr.bf16.mxu0 %v1592
    %1638 = vmatpush1.bf16.msra.mxu0 %v1591
    %1639 = vmatprep.subr.bf16.mxu0 0
    %1640 = vmatpush2.bf16.msra.mxu0 0
    %1641 = vmatprep.subr.bf16.mxu0 0
    %1642 = vmatpush2.bf16.msra.mxu0 0
    %1643 = vmatprep.subr.bf16.mxu0 0
    %1644 = vmatpush2.bf16.msra.mxu0 0
    %1645 = vmatprep.subr.bf16.mxu0 0
    %1646 = vmatpush2.bf16.msra.mxu0 0
    %1647 = vmatprep.subr.bf16.mxu0 0
    %1648 = vmatpush2.bf16.msra.mxu0 0
    %1649 = vmatprep.subr.bf16.mxu0 0
    %1650 = vmatpush2.bf16.msra.mxu0 0
    %1651 = vmatprep.subr.bf16.mxu0 0
    %1652 = vmatpush2.bf16.msra.mxu0 0
    %1653 = vmatprep.subr.bf16.mxu0 0
    %1654 = vmatpush2.bf16.msra.mxu0 0
    %1655 = vmatprep.mubr.bf16.mxu0 0
    %1656 = vmatmul.mubr.bf16.gmra.mxu0 %v1283
    %v1657 = vpop.f32.mrf.mxu0
    %v1658 = vadd.f32 %v1537, %v1657
    %v1659 = vpop.f32.mrf.mxu0
    %v1660 = vadd.f32 %v1539, %v1659
    %v1661 = vpop.f32.mrf.mxu0
    %v1662 = vpop.f32.mrf.mxu0
    %1663 = vdwg.mxu0
    %s1664 = scalar_lea.vmem [#allocation9], 1
    %v1665 = vld [vmem:[%s1664] ss:$8 sm:$0x3]
    %v1667 = vlaneseq
    %v1668 = vshrl.u32 %v1667, 7
    %v1669 = vsub.s32 0, %v1668
    %v1670 = vrot.slane %v1665, %v1669
    %v1671 = vlaneseq
    %v1672 = vshrl.u32 %v1671, 7
    %v1673 = vsub.s32 1, %v1672
    %v1674 = vrot.slane %v1665, %v1673
    %v1677 = vadd.f32 %v1658, %v1670
    %v1678 = vadd.f32 %v1660, %v1674
    %s1679 = scalar_lea.vmem [#allocation9], 2
    %v1680 = vld [vmem:[%s1679] ss:$8 sm:$0x3]
    %s1681 = scalar_lea.vmem [#allocation9], 3
    %v1682 = vld [vmem:[%s1681] ss:$8 sm:$0x3]
    %v1683 = vsel %vm161, %v1677, 0.0
    %v1684 = vsel %vm161, %v1678, 0.0
    %v1685 = vadd.f32 %v1683, %v1684
    %1686 = vadd.xlane.f32.xlu0 %v1685
    %v1687 = vpop.xlane.xlu0 %1686
    %v1688 = vrcp.pop 256.0
    %v1689 = vmul.f32 %v1687, %v1688
    %v1690 = vsub.f32 %v1677, %v1689
    %v1691 = vsub.f32 %v1678, %v1689
    %v1692 = vmul.f32 %v1690, %v1690
    %v1693 = vmul.f32 %v1691, %v1691
    %v1694 = vsel %vm161, %v1692, 0.0
    %v1695 = vsel %vm161, %v1693, 0.0
    %v1696 = vadd.f32 %v1694, %v1695
    %1697 = vadd.xlane.f32.xlu0 %v1696
    %v1698 = vpop.xlane.xlu0 %1697
    %v1699 = vmul.f32 %v1698, %v1688
    %v1700 = vadd.f32 %v1699, 1e-05
    %v1701 = vrsqrt.pop %v1700
    %v1702 = vmul.f32 %v1690, %v1701
    %v1703 = vmul.f32 %v1691, %v1701
    %v1705 = vlaneseq
    %v1706 = vshrl.u32 %v1705, 7
    %v1707 = vsub.s32 0, %v1706
    %v1708 = vrot.slane %v1680, %v1707
    %v1709 = vlaneseq
    %v1710 = vshrl.u32 %v1709, 7
    %v1711 = vsub.s32 1, %v1710
    %v1712 = vrot.slane %v1680, %v1711
    %v1715 = vmul.f32 %v1702, %v1708
    %v1716 = vmul.f32 %v1703, %v1712
    %v1718 = vlaneseq
    %v1719 = vshrl.u32 %v1718, 7
    %v1720 = vsub.s32 0, %v1719
    %v1721 = vrot.slane %v1682, %v1720
    %v1722 = vlaneseq
    %v1723 = vshrl.u32 %v1722, 7
    %v1724 = vsub.s32 1, %v1723
    %v1725 = vrot.slane %v1682, %v1724
    %v1728 = vadd.f32 %v1715, %v1721
    %v1729 = vadd.f32 %v1716, %v1725
    %v1730 = vmax.f32 %v1728, 0.0
    %v1731 = vmax.f32 %v1729, 0.0
    %v1732 = vpack.c.bf16 %v1730, %v1730
    %v1733 = vpack.c.bf16 %v1731, %v1731
    %v1734 = vld [vmem:[#allocation2 + $0x8] sm:$0xff]
    %v1735 = vld [vmem:[#allocation2 + $0x24] sm:$0xff]
    %v1736 = vld [vmem:[#allocation2 + $0x40] sm:$0xff]
    %v1737 = vld [vmem:[#allocation2 + $0x5c] sm:$0xff]
    %v1738 = vld [vmem:[#allocation2 + $0x78] sm:$0xff]
    %v1739 = vld [vmem:[#allocation2 + $0x94] sm:$0xff]
    %v1740 = vld [vmem:[#allocation2 + $0xb0] sm:$0xff]
    %v1741 = vld [vmem:[#allocation2 + $0xcc] sm:$0xff]
    %v1742 = vld [vmem:[#allocation2 + $0xe8] sm:$0xff]
    %v1743 = vld [vmem:[#allocation2 + $0x104] sm:$0xff]
    %v1744 = vld [vmem:[#allocation2 + $0x120] sm:$0xff]
    %v1745 = vld [vmem:[#allocation2 + $0x13c] sm:$0xff]
    %v1746 = vld [vmem:[#allocation2 + $0x158] sm:$0xff]
    %v1747 = vld [vmem:[#allocation2 + $0x174] sm:$0xff]
    %v1748 = vld [vmem:[#allocation2 + $0x190] sm:$0xff]
    %v1749 = vld [vmem:[#allocation2 + $0x1ac] sm:$0xff]
    %v1750 = vld [vmem:[#allocation2 + $0x1c8] sm:$0xff]
    %v1751 = vld [vmem:[#allocation2 + $0x1e4] sm:$0xff]
    %v1752 = vld [vmem:[#allocation2 + $0x200] sm:$0xff]
    %v1753 = vld [vmem:[#allocation2 + $0x21c] sm:$0xff]
    %v1754 = vld [vmem:[#allocation2 + $0x238] sm:$0xff]
    %v1755 = vld [vmem:[#allocation2 + $0x254] sm:$0xff]
    %v1756 = vld [vmem:[#allocation2 + $0x270] sm:$0xff]
    %v1757 = vld [vmem:[#allocation2 + $0x28c] sm:$0xff]
    %v1758 = vld [vmem:[#allocation2 + $0x2a8] sm:$0xff]
    %v1759 = vld [vmem:[#allocation2 + $0x2c4] sm:$0xff]
    %v1760 = vld [vmem:[#allocation2 + $0x2e0] sm:$0xff]
    %v1761 = vld [vmem:[#allocation2 + $0x2fc] sm:$0xff]
    %v1762 = vld [vmem:[#allocation2 + $0x318] sm:$0xff]
    %v1763 = vld [vmem:[#allocation2 + $0x334] sm:$0xff]
    %v1764 = vld [vmem:[#allocation2 + $0x350] sm:$0xff]
    %v1765 = vld [vmem:[#allocation2 + $0x36c] sm:$0xff]
    %s1766 = scalar_lea.vmem [#allocation9], 4
    %v1767 = vld [vmem:[%s1766] ss:$8 sm:$0x3]
    %v1800 = vunpack.c.l.b16 %v1734
    %v1801 = vunpack.c.h.b16 %v1734
    %v1802 = vunpack.c.l.b16 %v1735
    %v1803 = vunpack.c.h.b16 %v1735
    %v1804 = vunpack.c.l.b16 %v1736
    %v1805 = vunpack.c.h.b16 %v1736
    %v1806 = vunpack.c.l.b16 %v1737
    %v1807 = vunpack.c.h.b16 %v1737
    %v1808 = vunpack.c.l.b16 %v1738
    %v1809 = vunpack.c.h.b16 %v1738
    %v1810 = vunpack.c.l.b16 %v1739
    %v1811 = vunpack.c.h.b16 %v1739
    %v1812 = vunpack.c.l.b16 %v1740
    %v1813 = vunpack.c.h.b16 %v1740
    %v1814 = vunpack.c.l.b16 %v1741
    %v1815 = vunpack.c.h.b16 %v1741
    %v1816 = vunpack.c.l.b16 %v1742
    %v1817 = vunpack.c.h.b16 %v1742
    %v1818 = vunpack.c.l.b16 %v1743
    %v1819 = vunpack.c.h.b16 %v1743
    %v1820 = vunpack.c.l.b16 %v1744
    %v1821 = vunpack.c.h.b16 %v1744
    %v1822 = vunpack.c.l.b16 %v1745
    %v1823 = vunpack.c.h.b16 %v1745
    %v1824 = vunpack.c.l.b16 %v1746
    %v1825 = vunpack.c.h.b16 %v1746
    %v1826 = vunpack.c.l.b16 %v1747
    %v1827 = vunpack.c.h.b16 %v1747
    %v1828 = vunpack.c.l.b16 %v1748
    %v1829 = vunpack.c.h.b16 %v1748
    %v1830 = vunpack.c.l.b16 %v1749
    %v1831 = vunpack.c.h.b16 %v1749
    %v1832 = vunpack.c.l.b16 %v1750
    %v1833 = vunpack.c.h.b16 %v1750
    %v1834 = vunpack.c.l.b16 %v1751
    %v1835 = vunpack.c.h.b16 %v1751
    %v1836 = vunpack.c.l.b16 %v1752
    %v1837 = vunpack.c.h.b16 %v1752
    %v1838 = vunpack.c.l.b16 %v1753
    %v1839 = vunpack.c.h.b16 %v1753
    %v1840 = vunpack.c.l.b16 %v1754
    %v1841 = vunpack.c.h.b16 %v1754
    %v1842 = vunpack.c.l.b16 %v1755
    %v1843 = vunpack.c.h.b16 %v1755
    %v1844 = vunpack.c.l.b16 %v1756
    %v1845 = vunpack.c.h.b16 %v1756
    %v1846 = vunpack.c.l.b16 %v1757
    %v1847 = vunpack.c.h.b16 %v1757
    %v1848 = vunpack.c.l.b16 %v1758
    %v1849 = vunpack.c.h.b16 %v1758
    %v1850 = vunpack.c.l.b16 %v1759
    %v1851 = vunpack.c.h.b16 %v1759
    %v1852 = vunpack.c.l.b16 %v1760
    %v1853 = vunpack.c.h.b16 %v1760
    %v1854 = vunpack.c.l.b16 %v1761
    %v1855 = vunpack.c.h.b16 %v1761
    %v1856 = vunpack.c.l.b16 %v1762
    %v1857 = vunpack.c.h.b16 %v1762
    %v1858 = vunpack.c.l.b16 %v1763
    %v1859 = vunpack.c.h.b16 %v1763
    %v1860 = vunpack.c.l.b16 %v1764
    %v1861 = vunpack.c.h.b16 %v1764
    %v1862 = vunpack.c.l.b16 %v1765
    %v1863 = vunpack.c.h.b16 %v1765
    %v1864 = vpack.c.b16 %v1802, %v1800
    %v1865 = vpack.c.b16 %v1803, %v1801
    %v1866 = vpack.c.b16 %v1806, %v1804
    %v1867 = vpack.c.b16 %v1807, %v1805
    %v1868 = vpack.c.b16 %v1810, %v1808
    %v1869 = vpack.c.b16 %v1811, %v1809
    %v1870 = vpack.c.b16 %v1814, %v1812
    %v1871 = vpack.c.b16 %v1815, %v1813
    %v1872 = vpack.c.b16 %v1818, %v1816
    %v1873 = vpack.c.b16 %v1819, %v1817
    %v1874 = vpack.c.b16 %v1822, %v1820
    %v1875 = vpack.c.b16 %v1823, %v1821
    %v1876 = vpack.c.b16 %v1826, %v1824
    %v1877 = vpack.c.b16 %v1827, %v1825
    %v1878 = vpack.c.b16 %v1830, %v1828
    %v1879 = vpack.c.b16 %v1831, %v1829
    %v1880 = vpack.c.b16 %v1834, %v1832
    %v1881 = vpack.c.b16 %v1835, %v1833
    %v1882 = vpack.c.b16 %v1838, %v1836
    %v1883 = vpack.c.b16 %v1839, %v1837
    %v1884 = vpack.c.b16 %v1842, %v1840
    %v1885 = vpack.c.b16 %v1843, %v1841
    %v1886 = vpack.c.b16 %v1846, %v1844
    %v1887 = vpack.c.b16 %v1847, %v1845
    %v1888 = vpack.c.b16 %v1850, %v1848
    %v1889 = vpack.c.b16 %v1851, %v1849
    %v1890 = vpack.c.b16 %v1854, %v1852
    %v1891 = vpack.c.b16 %v1855, %v1853
    %v1892 = vpack.c.b16 %v1858, %v1856
    %v1893 = vpack.c.b16 %v1859, %v1857
    %v1894 = vpack.c.b16 %v1862, %v1860
    %v1895 = vpack.c.b16 %v1863, %v1861
    %v1929 = vlaneseq
    %v1930 = vshrl.u32 %v1929, 7
    %v1931 = vsub.s32 0, %v1930
    %v1932 = vrot.slane %v1767, %v1931
    %v1933 = vlaneseq
    %v1934 = vshrl.u32 %v1933, 7
    %v1935 = vsub.s32 1, %v1934
    %v1936 = vrot.slane %v1767, %v1935
    %1939 = vmatprep.subr.bf16.mxu0 %v1879
    %1940 = vmatpush1.bf16.msra.mxu0 %v1878
    %1941 = vmatprep.subr.bf16.mxu0 %v1877
    %1942 = vmatpush1.bf16.msra.mxu0 %v1876
    %1943 = vmatprep.subr.bf16.mxu0 %v1875
    %1944 = vmatpush1.bf16.msra.mxu0 %v1874
    %1945 = vmatprep.subr.bf16.mxu0 %v1873
    %1946 = vmatpush1.bf16.msra.mxu0 %v1872
    %1947 = vmatprep.subr.bf16.mxu0 %v1871
    %1948 = vmatpush1.bf16.msra.mxu0 %v1870
    %1949 = vmatprep.subr.bf16.mxu0 %v1869
    %1950 = vmatpush1.bf16.msra.mxu0 %v1868
    %1951 = vmatprep.subr.bf16.mxu0 %v1867
    %1952 = vmatpush1.bf16.msra.mxu0 %v1866
    %1953 = vmatprep.subr.bf16.mxu0 %v1865
    %1954 = vmatpush1.bf16.msra.mxu0 %v1864
    %1955 = vmatprep.subr.bf16.mxu0 %v1895
    %1956 = vmatpush2.bf16.msra.mxu0 %v1894
    %1957 = vmatprep.subr.bf16.mxu0 %v1893
    %1958 = vmatpush2.bf16.msra.mxu0 %v1892
    %1959 = vmatprep.subr.bf16.mxu0 %v1891
    %1960 = vmatpush2.bf16.msra.mxu0 %v1890
    %1961 = vmatprep.subr.bf16.mxu0 %v1889
    %1962 = vmatpush2.bf16.msra.mxu0 %v1888
    %1963 = vmatprep.subr.bf16.mxu0 %v1887
    %1964 = vmatpush2.bf16.msra.mxu0 %v1886
    %1965 = vmatprep.subr.bf16.mxu0 %v1885
    %1966 = vmatpush2.bf16.msra.mxu0 %v1884
    %1967 = vmatprep.subr.bf16.mxu0 %v1883
    %1968 = vmatpush2.bf16.msra.mxu0 %v1882
    %1969 = vmatprep.subr.bf16.mxu0 %v1881
    %1970 = vmatpush2.bf16.msra.mxu0 %v1880
    %1971 = vmatprep.mubr.bf16.mxu0 %v1733
    %1972 = vmatmul.mubr.bf16.gmra.mxu0 %v1732
    %v1973 = vpop.f32.mrf.mxu0
    %v1974 = vadd.f32 %v1932, %v1973
    %v1975 = vpop.f32.mrf.mxu0
    %v1976 = vadd.f32 %v1936, %v1975
    %v1977 = vpop.f32.mrf.mxu0
    %v1978 = vpop.f32.mrf.mxu0
    %1979 = vdwg.mxu0
    %s1980 = scalar_lea.vmem [#allocation9], 5
    %v1981 = vld [vmem:[%s1980] ss:$8 sm:$0x3]
    %s1982 = scalar_lea.vmem [#allocation9], 6
    %v1983 = vld [vmem:[%s1982] ss:$8 sm:$0x3]
    %v1984 = vsel %vm161, %v1974, 0.0
    %v1985 = vsel %vm161, %v1976, 0.0
    %v1986 = vadd.f32 %v1984, %v1985
    %1987 = vadd.xlane.f32.xlu0 %v1986
    %v1988 = vpop.xlane.xlu0 %1987
    %v1989 = vmul.f32 %v1988, %v1688
    %v1990 = vsub.f32 %v1974, %v1989
    %v1991 = vsub.f32 %v1976, %v1989
    %v1992 = vmul.f32 %v1990, %v1990
    %v1993 = vmul.f32 %v1991, %v1991
    %v1994 = vsel %vm161, %v1992, 0.0
    %v1995 = vsel %vm161, %v1993, 0.0
    %v1996 = vadd.f32 %v1994, %v1995
    %1997 = vadd.xlane.f32.xlu0 %v1996
    %v1998 = vpop.xlane.xlu0 %1997
    %v1999 = vmul.f32 %v1998, %v1688
    %v2000 = vadd.f32 %v1999, 1e-05
    %v2001 = vrsqrt.pop %v2000
    %v2002 = vmul.f32 %v1990, %v2001
    %v2003 = vmul.f32 %v1991, %v2001
    %v2005 = vlaneseq
    %v2006 = vshrl.u32 %v2005, 7
    %v2007 = vsub.s32 0, %v2006
    %v2008 = vrot.slane %v1981, %v2007
    %v2009 = vlaneseq
    %v2010 = vshrl.u32 %v2009, 7
    %v2011 = vsub.s32 1, %v2010
    %v2012 = vrot.slane %v1981, %v2011
    %v2015 = vmul.f32 %v2002, %v2008
    %v2016 = vmul.f32 %v2003, %v2012
    %v2018 = vlaneseq
    %v2019 = vshrl.u32 %v2018, 7
    %v2020 = vsub.s32 0, %v2019
    %v2021 = vrot.slane %v1983, %v2020
    %v2022 = vlaneseq
    %v2023 = vshrl.u32 %v2022, 7
    %v2024 = vsub.s32 1, %v2023
    %v2025 = vrot.slane %v1983, %v2024
    %v2028 = vadd.f32 %v2015, %v2021
    %v2029 = vadd.f32 %v2016, %v2025
    %v2030 = vmax.f32 %v2028, 0.0
    %v2031 = vmax.f32 %v2029, 0.0
    %v2032 = vpack.c.bf16 %v2030, %v2030
    %v2033 = vpack.c.bf16 %v2031, %v2031
    %v2034 = vld [vmem:[#allocation2 + $0x10] sm:$0xff]
    %v2035 = vld [vmem:[#allocation2 + $0x2c] sm:$0xff]
    %v2036 = vld [vmem:[#allocation2 + $0x48] sm:$0xff]
    %v2037 = vld [vmem:[#allocation2 + $0x64] sm:$0xff]
    %v2038 = vld [vmem:[#allocation2 + $0x80] sm:$0xff]
    %v2039 = vld [vmem:[#allocation2 + $0x9c] sm:$0xff]
    %v2040 = vld [vmem:[#allocation2 + $0xb8] sm:$0xff]
    %v2041 = vld [vmem:[#allocation2 + $0xd4] sm:$0xff]
    %v2042 = vld [vmem:[#allocation2 + $0xf0] sm:$0xff]
    %v2043 = vld [vmem:[#allocation2 + $0x10c] sm:$0xff]
    %v2044 = vld [vmem:[#allocation2 + $0x128] sm:$0xff]
    %v2045 = vld [vmem:[#allocation2 + $0x144] sm:$0xff]
    %v2046 = vld [vmem:[#allocation2 + $0x160] sm:$0xff]
    %v2047 = vld [vmem:[#allocation2 + $0x17c] sm:$0xff]
    %v2048 = vld [vmem:[#allocation2 + $0x198] sm:$0xff]
    %v2049 = vld [vmem:[#allocation2 + $0x1b4] sm:$0xff]
    %v2050 = vld [vmem:[#allocation2 + $0x1d0] sm:$0xff]
    %v2051 = vld [vmem:[#allocation2 + $0x1ec] sm:$0xff]
    %v2052 = vld [vmem:[#allocation2 + $0x208] sm:$0xff]
    %v2053 = vld [vmem:[#allocation2 + $0x224] sm:$0xff]
    %v2054 = vld [vmem:[#allocation2 + $0x240] sm:$0xff]
    %v2055 = vld [vmem:[#allocation2 + $0x25c] sm:$0xff]
    %v2056 = vld [vmem:[#allocation2 + $0x278] sm:$0xff]
    %v2057 = vld [vmem:[#allocation2 + $0x294] sm:$0xff]
    %v2058 = vld [vmem:[#allocation2 + $0x2b0] sm:$0xff]
    %v2059 = vld [vmem:[#allocation2 + $0x2cc] sm:$0xff]
    %v2060 = vld [vmem:[#allocation2 + $0x2e8] sm:$0xff]
    %v2061 = vld [vmem:[#allocation2 + $0x304] sm:$0xff]
    %v2062 = vld [vmem:[#allocation2 + $0x320] sm:$0xff]
    %v2063 = vld [vmem:[#allocation2 + $0x33c] sm:$0xff]
    %v2064 = vld [vmem:[#allocation2 + $0x358] sm:$0xff]
    %v2065 = vld [vmem:[#allocation2 + $0x374] sm:$0xff]
    %s2066 = scalar_lea.vmem [#allocation9], 7
    %v2067 = vld [vmem:[%s2066] ss:$8 sm:$0x3]
    %v2100 = vunpack.c.l.b16 %v2034
    %v2101 = vunpack.c.h.b16 %v2034
    %v2102 = vunpack.c.l.b16 %v2035
    %v2103 = vunpack.c.h.b16 %v2035
    %v2104 = vunpack.c.l.b16 %v2036
    %v2105 = vunpack.c.h.b16 %v2036
    %v2106 = vunpack.c.l.b16 %v2037
    %v2107 = vunpack.c.h.b16 %v2037
    %v2108 = vunpack.c.l.b16 %v2038
    %v2109 = vunpack.c.h.b16 %v2038
    %v2110 = vunpack.c.l.b16 %v2039
    %v2111 = vunpack.c.h.b16 %v2039
    %v2112 = vunpack.c.l.b16 %v2040
    %v2113 = vunpack.c.h.b16 %v2040
    %v2114 = vunpack.c.l.b16 %v2041
    %v2115 = vunpack.c.h.b16 %v2041
    %v2116 = vunpack.c.l.b16 %v2042
    %v2117 = vunpack.c.h.b16 %v2042
    %v2118 = vunpack.c.l.b16 %v2043
    %v2119 = vunpack.c.h.b16 %v2043
    %v2120 = vunpack.c.l.b16 %v2044
    %v2121 = vunpack.c.h.b16 %v2044
    %v2122 = vunpack.c.l.b16 %v2045
    %v2123 = vunpack.c.h.b16 %v2045
    %v2124 = vunpack.c.l.b16 %v2046
    %v2125 = vunpack.c.h.b16 %v2046
    %v2126 = vunpack.c.l.b16 %v2047
    %v2127 = vunpack.c.h.b16 %v2047
    %v2128 = vunpack.c.l.b16 %v2048
    %v2129 = vunpack.c.h.b16 %v2048
    %v2130 = vunpack.c.l.b16 %v2049
    %v2131 = vunpack.c.h.b16 %v2049
    %v2132 = vunpack.c.l.b16 %v2050
    %v2133 = vunpack.c.h.b16 %v2050
    %v2134 = vunpack.c.l.b16 %v2051
    %v2135 = vunpack.c.h.b16 %v2051
    %v2136 = vunpack.c.l.b16 %v2052
    %v2137 = vunpack.c.h.b16 %v2052
    %v2138 = vunpack.c.l.b16 %v2053
    %v2139 = vunpack.c.h.b16 %v2053
    %v2140 = vunpack.c.l.b16 %v2054
    %v2141 = vunpack.c.h.b16 %v2054
    %v2142 = vunpack.c.l.b16 %v2055
    %v2143 = vunpack.c.h.b16 %v2055
    %v2144 = vunpack.c.l.b16 %v2056
    %v2145 = vunpack.c.h.b16 %v2056
    %v2146 = vunpack.c.l.b16 %v2057
    %v2147 = vunpack.c.h.b16 %v2057
    %v2148 = vunpack.c.l.b16 %v2058
    %v2149 = vunpack.c.h.b16 %v2058
    %v2150 = vunpack.c.l.b16 %v2059
    %v2151 = vunpack.c.h.b16 %v2059
    %v2152 = vunpack.c.l.b16 %v2060
    %v2153 = vunpack.c.h.b16 %v2060
    %v2154 = vunpack.c.l.b16 %v2061
    %v2155 = vunpack.c.h.b16 %v2061
    %v2156 = vunpack.c.l.b16 %v2062
    %v2157 = vunpack.c.h.b16 %v2062
    %v2158 = vunpack.c.l.b16 %v2063
    %v2159 = vunpack.c.h.b16 %v2063
    %v2160 = vunpack.c.l.b16 %v2064
    %v2161 = vunpack.c.h.b16 %v2064
    %v2162 = vunpack.c.l.b16 %v2065
    %v2163 = vunpack.c.h.b16 %v2065
    %v2164 = vpack.c.b16 %v2102, %v2100
    %v2165 = vpack.c.b16 %v2103, %v2101
    %v2166 = vpack.c.b16 %v2106, %v2104
    %v2167 = vpack.c.b16 %v2107, %v2105
    %v2168 = vpack.c.b16 %v2110, %v2108
    %v2169 = vpack.c.b16 %v2111, %v2109
    %v2170 = vpack.c.b16 %v2114, %v2112
    %v2171 = vpack.c.b16 %v2115, %v2113
    %v2172 = vpack.c.b16 %v2118, %v2116
    %v2173 = vpack.c.b16 %v2119, %v2117
    %v2174 = vpack.c.b16 %v2122, %v2120
    %v2175 = vpack.c.b16 %v2123, %v2121
    %v2176 = vpack.c.b16 %v2126, %v2124
    %v2177 = vpack.c.b16 %v2127, %v2125
    %v2178 = vpack.c.b16 %v2130, %v2128
    %v2179 = vpack.c.b16 %v2131, %v2129
    %v2180 = vpack.c.b16 %v2134, %v2132
    %v2181 = vpack.c.b16 %v2135, %v2133
    %v2182 = vpack.c.b16 %v2138, %v2136
    %v2183 = vpack.c.b16 %v2139, %v2137
    %v2184 = vpack.c.b16 %v2142, %v2140
    %v2185 = vpack.c.b16 %v2143, %v2141
    %v2186 = vpack.c.b16 %v2146, %v2144
    %v2187 = vpack.c.b16 %v2147, %v2145
    %v2188 = vpack.c.b16 %v2150, %v2148
    %v2189 = vpack.c.b16 %v2151, %v2149
    %v2190 = vpack.c.b16 %v2154, %v2152
    %v2191 = vpack.c.b16 %v2155, %v2153
    %v2192 = vpack.c.b16 %v2158, %v2156
    %v2193 = vpack.c.b16 %v2159, %v2157
    %v2194 = vpack.c.b16 %v2162, %v2160
    %v2195 = vpack.c.b16 %v2163, %v2161
    %v2229 = vlaneseq
    %v2230 = vshrl.u32 %v2229, 7
    %v2231 = vsub.s32 0, %v2230
    %v2232 = vrot.slane %v2067, %v2231
    %v2233 = vlaneseq
    %v2234 = vshrl.u32 %v2233, 7
    %v2235 = vsub.s32 1, %v2234
    %v2236 = vrot.slane %v2067, %v2235
    %2239 = vmatprep.subr.bf16.mxu0 %v2179
    %2240 = vmatpush1.bf16.msra.mxu0 %v2178
    %2241 = vmatprep.subr.bf16.mxu0 %v2177
    %2242 = vmatpush1.bf16.msra.mxu0 %v2176
    %2243 = vmatprep.subr.bf16.mxu0 %v2175
    %2244 = vmatpush1.bf16.msra.mxu0 %v2174
    %2245 = vmatprep.subr.bf16.mxu0 %v2173
    %2246 = vmatpush1.bf16.msra.mxu0 %v2172
    %2247 = vmatprep.subr.bf16.mxu0 %v2171
    %2248 = vmatpush1.bf16.msra.mxu0 %v2170
    %2249 = vmatprep.subr.bf16.mxu0 %v2169
    %2250 = vmatpush1.bf16.msra.mxu0 %v2168
    %2251 = vmatprep.subr.bf16.mxu0 %v2167
    %2252 = vmatpush1.bf16.msra.mxu0 %v2166
    %2253 = vmatprep.subr.bf16.mxu0 %v2165
    %2254 = vmatpush1.bf16.msra.mxu0 %v2164
    %2255 = vmatprep.subr.bf16.mxu0 %v2195
    %2256 = vmatpush2.bf16.msra.mxu0 %v2194
    %2257 = vmatprep.subr.bf16.mxu0 %v2193
    %2258 = vmatpush2.bf16.msra.mxu0 %v2192
    %2259 = vmatprep.subr.bf16.mxu0 %v2191
    %2260 = vmatpush2.bf16.msra.mxu0 %v2190
    %2261 = vmatprep.subr.bf16.mxu0 %v2189
    %2262 = vmatpush2.bf16.msra.mxu0 %v2188
    %2263 = vmatprep.subr.bf16.mxu0 %v2187
    %2264 = vmatpush2.bf16.msra.mxu0 %v2186
    %2265 = vmatprep.subr.bf16.mxu0 %v2185
    %2266 = vmatpush2.bf16.msra.mxu0 %v2184
    %2267 = vmatprep.subr.bf16.mxu0 %v2183
    %2268 = vmatpush2.bf16.msra.mxu0 %v2182
    %2269 = vmatprep.subr.bf16.mxu0 %v2181
    %2270 = vmatpush2.bf16.msra.mxu0 %v2180
    %2271 = vmatprep.mubr.bf16.mxu0 %v2033
    %2272 = vmatmul.mubr.bf16.gmra.mxu0 %v2032
    %v2273 = vpop.f32.mrf.mxu0
    %v2274 = vadd.f32 %v2232, %v2273
    %v2275 = vpop.f32.mrf.mxu0
    %v2276 = vadd.f32 %v2236, %v2275
    %v2277 = vpop.f32.mrf.mxu0
    %v2278 = vpop.f32.mrf.mxu0
    %2279 = vdwg.mxu0
    %s2280 = scalar_lea.vmem [#allocation9], 32
    %v2281 = vld [vmem:[%s2280] ss:$8 sm:$0x3]
    %s2282 = scalar_lea.vmem [#allocation9], 33
    %v2283 = vld [vmem:[%s2282] ss:$8 sm:$0x3]
    %v2284 = vsel %vm161, %v2274, 0.0
    %v2285 = vsel %vm161, %v2276, 0.0
    %v2286 = vadd.f32 %v2284, %v2285
    %2287 = vadd.xlane.f32.xlu0 %v2286
    %v2288 = vpop.xlane.xlu0 %2287
    %v2289 = vmul.f32 %v2288, %v1688
    %v2290 = vsub.f32 %v2274, %v2289
    %v2291 = vsub.f32 %v2276, %v2289
    %v2292 = vmul.f32 %v2290, %v2290
    %v2293 = vmul.f32 %v2291, %v2291
    %v2294 = vsel %vm161, %v2292, 0.0
    %v2295 = vsel %vm161, %v2293, 0.0
    %v2296 = vadd.f32 %v2294, %v2295
    %2297 = vadd.xlane.f32.xlu0 %v2296
    %v2298 = vpop.xlane.xlu0 %2297
    %v2299 = vmul.f32 %v2298, %v1688
    %v2300 = vadd.f32 %v2299, 1e-05
    %v2301 = vrsqrt.pop %v2300
    %v2302 = vmul.f32 %v2290, %v2301
    %v2303 = vmul.f32 %v2291, %v2301
    %v2305 = vlaneseq
    %v2306 = vshrl.u32 %v2305, 7
    %v2307 = vsub.s32 0, %v2306
    %v2308 = vrot.slane %v2281, %v2307
    %v2309 = vlaneseq
    %v2310 = vshrl.u32 %v2309, 7
    %v2311 = vsub.s32 1, %v2310
    %v2312 = vrot.slane %v2281, %v2311
    %v2315 = vmul.f32 %v2302, %v2308
    %v2316 = vmul.f32 %v2303, %v2312
    %v2318 = vlaneseq
    %v2319 = vshrl.u32 %v2318, 7
    %v2320 = vsub.s32 0, %v2319
    %v2321 = vrot.slane %v2283, %v2320
    %v2322 = vlaneseq
    %v2323 = vshrl.u32 %v2322, 7
    %v2324 = vsub.s32 1, %v2323
    %v2325 = vrot.slane %v2283, %v2324
    %v2328 = vadd.f32 %v2315, %v2321
    %v2329 = vadd.f32 %v2316, %v2325
    %v2330 = vmax.f32 %v2328, 0.0
    %v2331 = vmax.f32 %v2329, 0.0
    %v2332 = vpack.c.bf16 %v2330, %v2330
    %v2333 = vpack.c.bf16 %v2331, %v2331
    %v2334 = vld [vmem:[#allocation2 + $0x18] sm:$0xf]
    %v2335 = vld [vmem:[#allocation2 + $0x34] sm:$0xf]
    %v2336 = vld [vmem:[#allocation2 + $0x50] sm:$0xf]
    %v2337 = vld [vmem:[#allocation2 + $0x6c] sm:$0xf]
    %v2338 = vld [vmem:[#allocation2 + $0x88] sm:$0xf]
    %v2339 = vld [vmem:[#allocation2 + $0xa4] sm:$0xf]
    %v2340 = vld [vmem:[#allocation2 + $0xc0] sm:$0xf]
    %v2341 = vld [vmem:[#allocation2 + $0xdc] sm:$0xf]
    %v2342 = vld [vmem:[#allocation2 + $0xf8] sm:$0xf]
    %v2343 = vld [vmem:[#allocation2 + $0x114] sm:$0xf]
    %v2344 = vld [vmem:[#allocation2 + $0x130] sm:$0xf]
    %v2345 = vld [vmem:[#allocation2 + $0x14c] sm:$0xf]
    %v2346 = vld [vmem:[#allocation2 + $0x168] sm:$0xf]
    %v2347 = vld [vmem:[#allocation2 + $0x184] sm:$0xf]
    %v2348 = vld [vmem:[#allocation2 + $0x1a0] sm:$0xf]
    %v2349 = vld [vmem:[#allocation2 + $0x1bc] sm:$0xf]
    %v2350 = vld [vmem:[#allocation2 + $0x1d8] sm:$0xf]
    %v2351 = vld [vmem:[#allocation2 + $0x1f4] sm:$0xf]
    %v2352 = vld [vmem:[#allocation2 + $0x210] sm:$0xf]
    %v2353 = vld [vmem:[#allocation2 + $0x22c] sm:$0xf]
    %v2354 = vld [vmem:[#allocation2 + $0x248] sm:$0xf]
    %v2355 = vld [vmem:[#allocation2 + $0x264] sm:$0xf]
    %v2356 = vld [vmem:[#allocation2 + $0x280] sm:$0xf]
    %v2357 = vld [vmem:[#allocation2 + $0x29c] sm:$0xf]
    %v2358 = vld [vmem:[#allocation2 + $0x2b8] sm:$0xf]
    %v2359 = vld [vmem:[#allocation2 + $0x2d4] sm:$0xf]
    %v2360 = vld [vmem:[#allocation2 + $0x2f0] sm:$0xf]
    %v2361 = vld [vmem:[#allocation2 + $0x30c] sm:$0xf]
    %v2362 = vld [vmem:[#allocation2 + $0x328] sm:$0xf]
    %v2363 = vld [vmem:[#allocation2 + $0x344] sm:$0xf]
    %v2364 = vld [vmem:[#allocation2 + $0x360] sm:$0xf]
    %v2365 = vld [vmem:[#allocation2 + $0x37c] sm:$0xf]
    %v2366 = vld [vmem:[#allocation9 + $0x22] ss:$0 sm:$0xff]
    %v2399 = vunpack.c.l.b16 %v2334
    %v2400 = vunpack.c.l.b16 %v2335
    %v2401 = vunpack.c.l.b16 %v2336
    %v2402 = vunpack.c.l.b16 %v2337
    %v2403 = vunpack.c.l.b16 %v2338
    %v2404 = vunpack.c.l.b16 %v2339
    %v2405 = vunpack.c.l.b16 %v2340
    %v2406 = vunpack.c.l.b16 %v2341
    %v2407 = vunpack.c.l.b16 %v2342
    %v2408 = vunpack.c.l.b16 %v2343
    %v2409 = vunpack.c.l.b16 %v2344
    %v2410 = vunpack.c.l.b16 %v2345
    %v2411 = vunpack.c.l.b16 %v2346
    %v2412 = vunpack.c.l.b16 %v2347
    %v2413 = vunpack.c.l.b16 %v2348
    %v2414 = vunpack.c.l.b16 %v2349
    %v2415 = vunpack.c.l.b16 %v2350
    %v2416 = vunpack.c.l.b16 %v2351
    %v2417 = vunpack.c.l.b16 %v2352
    %v2418 = vunpack.c.l.b16 %v2353
    %v2419 = vunpack.c.l.b16 %v2354
    %v2420 = vunpack.c.l.b16 %v2355
    %v2421 = vunpack.c.l.b16 %v2356
    %v2422 = vunpack.c.l.b16 %v2357
    %v2423 = vunpack.c.l.b16 %v2358
    %v2424 = vunpack.c.l.b16 %v2359
    %v2425 = vunpack.c.l.b16 %v2360
    %v2426 = vunpack.c.l.b16 %v2361
    %v2427 = vunpack.c.l.b16 %v2362
    %v2428 = vunpack.c.l.b16 %v2363
    %v2429 = vunpack.c.l.b16 %v2364
    %v2430 = vunpack.c.l.b16 %v2365
    %v2431 = vpack.c.b16 %v2400, %v2399
    %v2432 = vpack.c.b16 %v2402, %v2401
    %v2433 = vpack.c.b16 %v2404, %v2403
    %v2434 = vpack.c.b16 %v2406, %v2405
    %v2435 = vpack.c.b16 %v2408, %v2407
    %v2436 = vpack.c.b16 %v2410, %v2409
    %v2437 = vpack.c.b16 %v2412, %v2411
    %v2438 = vpack.c.b16 %v2414, %v2413
    %v2439 = vpack.c.b16 %v2416, %v2415
    %v2440 = vpack.c.b16 %v2418, %v2417
    %v2441 = vpack.c.b16 %v2420, %v2419
    %v2442 = vpack.c.b16 %v2422, %v2421
    %v2443 = vpack.c.b16 %v2424, %v2423
    %v2444 = vpack.c.b16 %v2426, %v2425
    %v2445 = vpack.c.b16 %v2428, %v2427
    %v2446 = vpack.c.b16 %v2430, %v2429
    %2463 = vmatprep.subr.bf16.mxu0 0
    %2464 = vmatpush1.bf16.msra.mxu0 %v2438
    %2465 = vmatprep.subr.bf16.mxu0 0
    %2466 = vmatpush1.bf16.msra.mxu0 %v2437
    %2467 = vmatprep.subr.bf16.mxu0 0
    %2468 = vmatpush1.bf16.msra.mxu0 %v2436
    %2469 = vmatprep.subr.bf16.mxu0 0
    %2470 = vmatpush1.bf16.msra.mxu0 %v2435
    %2471 = vmatprep.subr.bf16.mxu0 0
    %2472 = vmatpush1.bf16.msra.mxu0 %v2434
    %2473 = vmatprep.subr.bf16.mxu0 0
    %2474 = vmatpush1.bf16.msra.mxu0 %v2433
    %2475 = vmatprep.subr.bf16.mxu0 0
    %2476 = vmatpush1.bf16.msra.mxu0 %v2432
    %2477 = vmatprep.subr.bf16.mxu0 0
    %2478 = vmatpush1.bf16.msra.mxu0 %v2431
    %2479 = vmatprep.subr.bf16.mxu0 0
    %2480 = vmatpush2.bf16.msra.mxu0 %v2446
    %2481 = vmatprep.subr.bf16.mxu0 0
    %2482 = vmatpush2.bf16.msra.mxu0 %v2445
    %2483 = vmatprep.subr.bf16.mxu0 0
    %2484 = vmatpush2.bf16.msra.mxu0 %v2444
    %2485 = vmatprep.subr.bf16.mxu0 0
    %2486 = vmatpush2.bf16.msra.mxu0 %v2443
    %2487 = vmatprep.subr.bf16.mxu0 0
    %2488 = vmatpush2.bf16.msra.mxu0 %v2442
    %2489 = vmatprep.subr.bf16.mxu0 0
    %2490 = vmatpush2.bf16.msra.mxu0 %v2441
    %2491 = vmatprep.subr.bf16.mxu0 0
    %2492 = vmatpush2.bf16.msra.mxu0 %v2440
    %2493 = vmatprep.subr.bf16.mxu0 0
    %2494 = vmatpush2.bf16.msra.mxu0 %v2439
    %2495 = vmatprep.mubr.bf16.mxu0 %v2333
    %2496 = vmatmul.mubr.bf16.gmra.mxu0 %v2332
    %v2497 = vpop.f32.mrf.mxu0
    %v2498 = vadd.f32 %v2366, %v2497
    %v2499 = vpop.f32.mrf.mxu0
    %v2500 = vpop.f32.mrf.mxu0
    %v2501 = vpop.f32.mrf.mxu0
    %2502 = vdwg.mxu0
    %2503 = vst [vmem:[%s6] sm:$0x1] %v2498
    // Predicated region
    $region38: #{pallas_forward.1} parent=1 // pred_check
      _
    $region39: #{pallas_forward.1} parent=1 // pred_check_branch
      %2505 = sbr.rel (0) target = $region41
    $region40: #{pallas_forward.1} parent=1 // pred_region
      _
    $region41: #{pallas_forward.1} parent=1 // pred_fallthru
      _
    // Predicated region
    $region42: #{pallas_forward.1} parent=1 // pred_check
      _
    $region43: #{pallas_forward.1} parent=1 // pred_check_branch
      %2507 = sbr.rel (0) target = $region45
    $region44: #{pallas_forward.1} parent=1 // pred_region
      _
    $region45: #{pallas_forward.1} parent=1 // pred_fallthru
      _
    %2508 = vsyncpa [#allocation6], 1
    %2509 = vsyncpa [#allocation8], 1
  %2510 = vsyncmov [#allocation4]
  %s2511 = vpop.sfrf %2510
  %p2512 = scmp.eq.s32.totalorder %s2511, 0
  %p2513 = pneg %p2512
  %2515 = shalt.err (%p2513)

</llo_original>
